<compile_context>
chip_gen: v7x
topology: tpu7x:2x2x1
jax: 0.10.0
libtpu: 0.0.40
codegen_flags: <defaults>
</compile_context>

<pallas_src>
import functools

import jax
import jax.numpy as jnp
from jax.experimental import pallas as pl
from jax.experimental.pallas import tpu as pltpu


def resconv_kernel(x_ref, m_ref, w1_ref, b1_ref, w2_ref, b2_ref,
                   o_ref, xp_ref, pat_ref, *, H, W, Cp, K, pad):
    """Fused conv3x3+bias+lrelu -> conv3x3+bias -> 0.1*y + residual.

    x_ref   : (1, Cp, H*W)  f32     unpadded input (also the residual)
    m_ref   : (K, H*W)      bf16    {0,1} W-wrap masks, one row per kw
    w*_ref  : (Cp, K*K*Cp)  bf16    weights, tap-major / channel-minor columns
    b*_ref  : (Cp, 1)       f32     biases
    o_ref   : (1, Cp, H*W)          output
    xp_ref  : (Cp, L)       bf16    flat halo-padded image, L = H*W + 2*pad*(W+1)
    pat_ref : (K*K*Cp, H*W) bf16    im2col scratch
    """
    HW = H * W
    off = pad * (W + 1)            # interior start inside the flat padded buffer
    L = HW + 2 * off

    # Zero only the halo (2 * Cp * off elements).  Done every step so megacore
    # grid sharding stays correct (scratch is per-core and uninitialized).
    zhalo = jnp.zeros((Cp, off), jnp.bfloat16)
    xp_ref[:, 0:off] = zhalo
    xp_ref[:, off + HW:L] = zhalo

    def im2col():
        """Build the (K*K*Cp, HW) im2col matrix from the padded scratch."""
        for kh in range(K):
            for kw in range(K):
                s = kh * W + kw                      # static flat window start
                xs = xp_ref[:, s:s + HW]             # (Cp, HW) bf16, lane-dense
                if kw != pad:                        # precomputed {0,1} wrap mask
                    xs = xs * m_ref[kw:kw + 1, :]
                t = kh * K + kw
                pat_ref[t * Cp:(t + 1) * Cp, :] = xs  # 16-sublane aligned store
        return pat_ref[...]

    # ---- conv1 + bias + LeakyReLU(0.2) ----
    xp_ref[:, off:off + HW] = x_ref[0].astype(jnp.bfloat16)
    y1 = jnp.dot(w1_ref[...], im2col(), preferred_element_type=jnp.float32)
    y1 = y1 + b1_ref[...]
    y1 = jnp.maximum(y1, 0.2 * y1)                    # LeakyReLU(0.2), f32

    # ---- conv2 + bias ----
    xp_ref[:, off:off + HW] = y1.astype(jnp.bfloat16)
    y2 = jnp.dot(w2_ref[...], im2col(), preferred_element_type=jnp.float32)
    y2 = y2 + b2_ref[...]

    # ---- residual combine (residual re-read from the f32 input block) ----
    o_ref[0] = (0.1 * y2 + x_ref[0].astype(jnp.float32)).astype(o_ref.dtype)


def res_conv2d_layer(x_nchw, w1_oihw, b1, w2_oihw, b2):
    """x_nchw: (B, C, H, W); weights in PyTorch OIHW layout (C, C, K, K)."""
    B, C, H, W = x_nchw.shape
    K = w1_oihw.shape[-1]
    pad = K // 2
    HW = H * W
    off = pad * (W + 1)
    L = HW + 2 * off

    # Pad channels to the bf16 sublane tile so every tap-block store is aligned.
    SUB = 16
    Cp = ((C + SUB - 1) // SUB) * SUB
    KKCp = K * K * Cp

    # Keep NCHW; flatten spatial so the lane axis carries H*W.  The channel pad
    # is a no-op whenever C is already a multiple of 16 (real HRNet widths).
    x_flat = x_nchw.reshape(B, C, HW)
    if Cp != C:
        x_flat = jnp.pad(x_flat, ((0, 0), (0, Cp - C), (0, 0)))

    def prep_w(w):
        # OIHW -> (O, kh, kw, I), zero-pad O and I to Cp, -> (Cp, K*K*Cp) bf16.
        w = jnp.transpose(w, (0, 2, 3, 1))
        if Cp != C:
            w = jnp.pad(w, ((0, Cp - C), (0, 0), (0, 0), (0, Cp - C)))
        return w.reshape(Cp, KKCp).astype(jnp.bfloat16)

    def prep_b(b):
        if Cp != C:
            b = jnp.pad(b, (0, Cp - C))
        return b.reshape(Cp, 1).astype(jnp.float32)

    w1f, w2f = prep_w(w1_oihw), prep_w(w2_oihw)
    b1c, b2c = prep_b(b1), prep_b(b2)

    # {0,1} W-wrap masks, one row per kw offset: valid iff 0 <= (p%W)+kw-pad < W.
    col = jnp.tile(jnp.arange(W, dtype=jnp.int32), H)             # (HW,)
    kw_off = jnp.arange(K, dtype=jnp.int32)[:, None] - pad        # (K, 1)
    wmask = ((col[None, :] + kw_off >= 0) &
             (col[None, :] + kw_off < W)).astype(jnp.bfloat16)    # (K, HW)

    kernel = functools.partial(resconv_kernel, H=H, W=W, Cp=Cp, K=K, pad=pad)

    # VMEM budget from the actual buffers (+30% headroom), floored at the
    # default 32 MiB so small cases never under-provision the compiler.
    bf = 2
    xb = jnp.dtype(x_flat.dtype).itemsize
    scratch_bytes = (Cp * L + KKCp * HW) * bf                     # xp + pat
    io_bytes = 2 * 2 * (Cp * HW * xb)                             # x + out, dbl-buffered
    wgt_bytes = 2 * 2 * (Cp * KKCp * bf)                          # W1 + W2, dbl-buffered
    misc_bytes = 2 * 2 * (Cp * 128 * 4) + 2 * (K * max(HW, 128) * bf)  # biases + masks
    need = scratch_bytes + io_bytes + wgt_bytes + misc_bytes
    vmem_limit = min(max(int(need * 1.3) + (1 << 20), 32 << 20), 128 << 20)

    out_flat = pl.pallas_call(
        kernel,
        out_shape=jax.ShapeDtypeStruct((B, Cp, HW), x_nchw.dtype),
        grid=(B,),
        in_specs=[
            pl.BlockSpec((1, Cp, HW), lambda b: (b, 0, 0)),   # x (also residual)
            pl.BlockSpec((K, HW), lambda b: (0, 0)),          # W-wrap masks
            pl.BlockSpec((Cp, KKCp), lambda b: (0, 0)),       # W1 (im2col layout)
            pl.BlockSpec((Cp, 1), lambda b: (0, 0)),          # b1
            pl.BlockSpec((Cp, KKCp), lambda b: (0, 0)),       # W2
            pl.BlockSpec((Cp, 1), lambda b: (0, 0)),          # b2
        ],
        out_specs=pl.BlockSpec((1, Cp, HW), lambda b: (b, 0, 0)),
        scratch_shapes=[
            pltpu.VMEM((Cp, L), jnp.bfloat16),                # flat padded image
            pltpu.VMEM((KKCp, HW), jnp.bfloat16),             # im2col buffer
        ],
        compiler_params=pltpu.CompilerParams(
            dimension_semantics=("parallel",),
            vmem_limit_bytes=vmem_limit),
    )(x_flat, wmask, w1f, b1c, w2f, b2c)

    if Cp != C:
        out_flat = out_flat[:, :C, :]
    return out_flat.reshape(B, C, H, W)


def _reference(x, w1, b1, w2, b2):
    """Pure-JAX f32 reference (NCHW / OIHW convs)."""
    dn = jax.lax.conv_dimension_numbers(x.shape, w1.shape,
                                        ("NCHW", "OIHW", "NCHW"))
    y = jax.lax.conv_general_dilated(x, w1, (1, 1), "SAME",
                                     dimension_numbers=dn)
    y = y + b1[None, :, None, None]
    y = jnp.where(y > 0, y, 0.2 * y)
    y = jax.lax.conv_general_dilated(y, w2, (1, 1), "SAME",
                                     dimension_numbers=dn)
    y = y + b2[None, :, None, None]
    return 0.1 * y + x


if __name__ == "__main__":
    key = jax.random.PRNGKey(0)
    kx, k1, kb1, k2, kb2 = jax.random.split(key, 5)

    B, C, H, W, K = 2, 4, 16, 16, 3
    x = jax.random.normal(kx, (B, C, H, W), dtype=jnp.float32)
    # nn.Conv2d parameter shapes: weight (C_out, C_in, K, K), bias (C_out,)
    w1 = jax.random.normal(k1, (C, C, K, K), dtype=jnp.float32) * 0.1
    b1 = jax.random.normal(kb1, (C,), dtype=jnp.float32) * 0.1
    w2 = jax.random.normal(k2, (C, C, K, K), dtype=jnp.float32) * 0.1
    b2 = jax.random.normal(kb2, (C,), dtype=jnp.float32) * 0.1

    out = res_conv2d_layer(x, w1, b1, w2, b2)
    out = jax.block_until_ready(out)

    ref = _reference(x, w1, b1, w2, b2)
    assert out.shape == (B, C, H, W)
    # bf16 conv operands (f32 accumulation) vs f32 reference -> loosened tolerance.
    assert jnp.allclose(out, ref, atol=1e-2, rtol=1e-2), "mismatch vs reference"

    print("KERNEL_OK")
</pallas_src>

<mosaic_0001>
module attributes {stable_mosaic.version = 11 : i64} {
  func.func @resconv_kernel(%arg0: i32, %arg1: memref<1x16x256xf32, #tpu.memory_space<vmem>>, %arg2: memref<3x256xbf16, #tpu.memory_space<vmem>>, %arg3: memref<16x144xbf16, #tpu.memory_space<vmem>>, %arg4: memref<16x1xf32, #tpu.memory_space<vmem>>, %arg5: memref<16x144xbf16, #tpu.memory_space<vmem>>, %arg6: memref<16x1xf32, #tpu.memory_space<vmem>>, %arg7: memref<1x16x256xf32, #tpu.memory_space<vmem>>, %arg8: memref<16x290xbf16, #tpu.memory_space<vmem>>, %arg9: memref<144x256xbf16, #tpu.memory_space<vmem>>) attributes {dimension_semantics = [#tpu.dimension_semantics<parallel>], iteration_bounds = array<i64: 2>, scalar_prefetch = 0 : i64, scratch_operands = 2 : i64, tpu.core_type = #tpu.core_type<tc>, window_params = [{transform_indices = @transform_0, window_bounds = array<i64: 1, 16, 256>}, {pipeline_mode = #tpu.pipeline_mode<synchronous>, transform_indices = @transform_1, window_bounds = array<i64: 3, 256>}, {pipeline_mode = #tpu.pipeline_mode<synchronous>, transform_indices = @transform_2, window_bounds = array<i64: 16, 144>}, {pipeline_mode = #tpu.pipeline_mode<synchronous>, transform_indices = @transform_3, window_bounds = array<i64: 16, 1>}, {pipeline_mode = #tpu.pipeline_mode<synchronous>, transform_indices = @transform_4, window_bounds = array<i64: 16, 144>}, {pipeline_mode = #tpu.pipeline_mode<synchronous>, transform_indices = @transform_5, window_bounds = array<i64: 16, 1>}, {transform_indices = @transform_6, window_bounds = array<i64: 1, 16, 256>}]} {
    %cst = arith.constant 0.000000e+00 : bf16
    %0 = vector.broadcast %cst : bf16 to vector<16x17xbf16>
    %c0 = arith.constant 0 : index
    %c0_0 = arith.constant 0 : index
    %1 = vector.load %arg8[%c0, %c0_0] : memref<16x290xbf16, #tpu.memory_space<vmem>>, vector<16x17xbf16>
    tpu.vector_store %arg8[%c0, %c0_0], %0 {strides = array<i32>} : memref<16x290xbf16, #tpu.memory_space<vmem>>, vector<16x17xbf16>,
    %c0_1 = arith.constant 0 : index
    %c273 = arith.constant 273 : index
    %2 = vector.load %arg8[%c0_1, %c273] : memref<16x290xbf16, #tpu.memory_space<vmem>>, vector<16x17xbf16>
    tpu.vector_store %arg8[%c0_1, %c273], %0 {strides = array<i32>} : memref<16x290xbf16, #tpu.memory_space<vmem>>, vector<16x17xbf16>,
    %c0_2 = arith.constant 0 : index
    %c0_3 = arith.constant 0 : index
    %c0_4 = arith.constant 0 : index
    %3 = vector.load %arg1[%c0_2, %c0_3, %c0_4] : memref<1x16x256xf32, #tpu.memory_space<vmem>>, vector<1x16x256xf32>
    %4 = vector.shape_cast %3 : vector<1x16x256xf32> to vector<16x256xf32>
    %5 = arith.truncf %4 : vector<16x256xf32> to vector<16x256xbf16>
    %c0_5 = arith.constant 0 : index
    %c17 = arith.constant 17 : index
    %6 = vector.load %arg8[%c0_5, %c17] : memref<16x290xbf16, #tpu.memory_space<vmem>>, vector<16x256xbf16>
    tpu.vector_store %arg8[%c0_5, %c17], %5 {strides = array<i32>} : memref<16x290xbf16, #tpu.memory_space<vmem>>, vector<16x256xbf16>,
    %c0_6 = arith.constant 0 : index
    %c0_7 = arith.constant 0 : index
    %7 = vector.load %arg3[%c0_6, %c0_7] : memref<16x144xbf16, #tpu.memory_space<vmem>>, vector<16x144xbf16>
    %c0_8 = arith.constant 0 : index
    %c0_9 = arith.constant 0 : index
    %8 = vector.load %arg8[%c0_8, %c0_9] : memref<16x290xbf16, #tpu.memory_space<vmem>>, vector<16x256xbf16>
    %c0_10 = arith.constant 0 : index
    %c0_11 = arith.constant 0 : index
    %9 = vector.load %arg2[%c0_10, %c0_11] : memref<3x256xbf16, #tpu.memory_space<vmem>>, vector<1x256xbf16>
    %10 = vector.broadcast %9 : vector<1x256xbf16> to vector<16x256xbf16>
    %11 = arith.mulf %8, %10 : vector<16x256xbf16>
    %c0_12 = arith.constant 0 : index
    %c0_13 = arith.constant 0 : index
    %12 = vector.load %arg9[%c0_12, %c0_13] : memref<144x256xbf16, #tpu.memory_space<vmem>>, vector<16x256xbf16>
    tpu.vector_store %arg9[%c0_12, %c0_13], %11 {strides = array<i32>} : memref<144x256xbf16, #tpu.memory_space<vmem>>, vector<16x256xbf16>,
    %c0_14 = arith.constant 0 : index
    %c1 = arith.constant 1 : index
    %13 = vector.load %arg8[%c0_14, %c1] : memref<16x290xbf16, #tpu.memory_space<vmem>>, vector<16x256xbf16>
    %c16 = arith.constant 16 : index
    %c0_15 = arith.constant 0 : index
    %14 = vector.load %arg9[%c16, %c0_15] : memref<144x256xbf16, #tpu.memory_space<vmem>>, vector<16x256xbf16>
    tpu.vector_store %arg9[%c16, %c0_15], %13 {strides = array<i32>} : memref<144x256xbf16, #tpu.memory_space<vmem>>, vector<16x256xbf16>,
    %c0_16 = arith.constant 0 : index
    %c2 = arith.constant 2 : index
    %15 = vector.load %arg8[%c0_16, %c2] : memref<16x290xbf16, #tpu.memory_space<vmem>>, vector<16x256xbf16>
    %c2_17 = arith.constant 2 : index
    %c0_18 = arith.constant 0 : index
    %16 = vector.load %arg2[%c2_17, %c0_18] : memref<3x256xbf16, #tpu.memory_space<vmem>>, vector<1x256xbf16>
    %17 = vector.broadcast %16 : vector<1x256xbf16> to vector<16x256xbf16>
    %18 = arith.mulf %15, %17 : vector<16x256xbf16>
    %c32 = arith.constant 32 : index
    %c0_19 = arith.constant 0 : index
    %19 = vector.load %arg9[%c32, %c0_19] : memref<144x256xbf16, #tpu.memory_space<vmem>>, vector<16x256xbf16>
    tpu.vector_store %arg9[%c32, %c0_19], %18 {strides = array<i32>} : memref<144x256xbf16, #tpu.memory_space<vmem>>, vector<16x256xbf16>,
    %c0_20 = arith.constant 0 : index
    %c16_21 = arith.constant 16 : index
    %20 = vector.load %arg8[%c0_20, %c16_21] : memref<16x290xbf16, #tpu.memory_space<vmem>>, vector<16x256xbf16>
    %c0_22 = arith.constant 0 : index
    %c0_23 = arith.constant 0 : index
    %21 = vector.load %arg2[%c0_22, %c0_23] : memref<3x256xbf16, #tpu.memory_space<vmem>>, vector<1x256xbf16>
    %22 = vector.broadcast %21 : vector<1x256xbf16> to vector<16x256xbf16>
    %23 = arith.mulf %20, %22 : vector<16x256xbf16>
    %c48 = arith.constant 48 : index
    %c0_24 = arith.constant 0 : index
    %24 = vector.load %arg9[%c48, %c0_24] : memref<144x256xbf16, #tpu.memory_space<vmem>>, vector<16x256xbf16>
    tpu.vector_store %arg9[%c48, %c0_24], %23 {strides = array<i32>} : memref<144x256xbf16, #tpu.memory_space<vmem>>, vector<16x256xbf16>,
    %c0_25 = arith.constant 0 : index
    %c17_26 = arith.constant 17 : index
    %25 = vector.load %arg8[%c0_25, %c17_26] : memref<16x290xbf16, #tpu.memory_space<vmem>>, vector<16x256xbf16>
    %c64 = arith.constant 64 : index
    %c0_27 = arith.constant 0 : index
    %26 = vector.load %arg9[%c64, %c0_27] : memref<144x256xbf16, #tpu.memory_space<vmem>>, vector<16x256xbf16>
    tpu.vector_store %arg9[%c64, %c0_27], %25 {strides = array<i32>} : memref<144x256xbf16, #tpu.memory_space<vmem>>, vector<16x256xbf16>,
    %c0_28 = arith.constant 0 : index
    %c18 = arith.constant 18 : index
    %27 = vector.load %arg8[%c0_28, %c18] : memref<16x290xbf16, #tpu.memory_space<vmem>>, vector<16x256xbf16>
    %c2_29 = arith.constant 2 : index
    %c0_30 = arith.constant 0 : index
    %28 = vector.load %arg2[%c2_29, %c0_30] : memref<3x256xbf16, #tpu.memory_space<vmem>>, vector<1x256xbf16>
    %29 = vector.broadcast %28 : vector<1x256xbf16> to vector<16x256xbf16>
    %30 = arith.mulf %27, %29 : vector<16x256xbf16>
    %c80 = arith.constant 80 : index
    %c0_31 = arith.constant 0 : index
    %31 = vector.load %arg9[%c80, %c0_31] : memref<144x256xbf16, #tpu.memory_space<vmem>>, vector<16x256xbf16>
    tpu.vector_store %arg9[%c80, %c0_31], %30 {strides = array<i32>} : memref<144x256xbf16, #tpu.memory_space<vmem>>, vector<16x256xbf16>,
    %c0_32 = arith.constant 0 : index
    %c32_33 = arith.constant 32 : index
    %32 = vector.load %arg8[%c0_32, %c32_33] : memref<16x290xbf16, #tpu.memory_space<vmem>>, vector<16x256xbf16>
    %c0_34 = arith.constant 0 : index
    %c0_35 = arith.constant 0 : index
    %33 = vector.load %arg2[%c0_34, %c0_35] : memref<3x256xbf16, #tpu.memory_space<vmem>>, vector<1x256xbf16>
    %34 = vector.broadcast %33 : vector<1x256xbf16> to vector<16x256xbf16>
    %35 = arith.mulf %32, %34 : vector<16x256xbf16>
    %c96 = arith.constant 96 : index
    %c0_36 = arith.constant 0 : index
    %36 = vector.load %arg9[%c96, %c0_36] : memref<144x256xbf16, #tpu.memory_space<vmem>>, vector<16x256xbf16>
    tpu.vector_store %arg9[%c96, %c0_36], %35 {strides = array<i32>} : memref<144x256xbf16, #tpu.memory_space<vmem>>, vector<16x256xbf16>,
    %c0_37 = arith.constant 0 : index
    %c33 = arith.constant 33 : index
    %37 = vector.load %arg8[%c0_37, %c33] : memref<16x290xbf16, #tpu.memory_space<vmem>>, vector<16x256xbf16>
    %c112 = arith.constant 112 : index
    %c0_38 = arith.constant 0 : index
    %38 = vector.load %arg9[%c112, %c0_38] : memref<144x256xbf16, #tpu.memory_space<vmem>>, vector<16x256xbf16>
    tpu.vector_store %arg9[%c112, %c0_38], %37 {strides = array<i32>} : memref<144x256xbf16, #tpu.memory_space<vmem>>, vector<16x256xbf16>,
    %c0_39 = arith.constant 0 : index
    %c34 = arith.constant 34 : index
    %39 = vector.load %arg8[%c0_39, %c34] : memref<16x290xbf16, #tpu.memory_space<vmem>>, vector<16x256xbf16>
    %c2_40 = arith.constant 2 : index
    %c0_41 = arith.constant 0 : index
    %40 = vector.load %arg2[%c2_40, %c0_41] : memref<3x256xbf16, #tpu.memory_space<vmem>>, vector<1x256xbf16>
    %41 = vector.broadcast %40 : vector<1x256xbf16> to vector<16x256xbf16>
    %42 = arith.mulf %39, %41 : vector<16x256xbf16>
    %c128 = arith.constant 128 : index
    %c0_42 = arith.constant 0 : index
    %43 = vector.load %arg9[%c128, %c0_42] : memref<144x256xbf16, #tpu.memory_space<vmem>>, vector<16x256xbf16>
    tpu.vector_store %arg9[%c128, %c0_42], %42 {strides = array<i32>} : memref<144x256xbf16, #tpu.memory_space<vmem>>, vector<16x256xbf16>,
    %c0_43 = arith.constant 0 : index
    %c0_44 = arith.constant 0 : index
    %44 = vector.load %arg9[%c0_43, %c0_44] : memref<144x256xbf16, #tpu.memory_space<vmem>>, vector<144x256xbf16>
    %cst_45 = arith.constant dense<0.000000e+00> : vector<16x256xf32>
    %45 = tpu.matmul %7, %44, %cst_45 {dimension_numbers = #tpu.dot_dimension_numbers<[1], [0], [0], [1], [0, 0, 1, 1], [], []>} : vector<16x144xbf16>, vector<144x256xbf16>, vector<16x256xf32> -> vector<16x256xf32>
    %c0_46 = arith.constant 0 : index
    %c0_47 = arith.constant 0 : index
    %46 = vector.load %arg4[%c0_46, %c0_47] : memref<16x1xf32, #tpu.memory_space<vmem>>, vector<16x1xf32>
    %47 = vector.broadcast %46 : vector<16x1xf32> to vector<16x256xf32>
    %48 = arith.addf %45, %47 : vector<16x256xf32>
    %cst_48 = arith.constant 2.000000e-01 : f32
    %49 = vector.broadcast %cst_48 : f32 to vector<16x256xf32>
    %50 = arith.mulf %49, %48 : vector<16x256xf32>
    %51 = arith.maximumf %48, %50 : vector<16x256xf32>
    %52 = arith.truncf %51 : vector<16x256xf32> to vector<16x256xbf16>
    %c0_49 = arith.constant 0 : index
    %c17_50 = arith.constant 17 : index
    %53 = vector.load %arg8[%c0_49, %c17_50] : memref<16x290xbf16, #tpu.memory_space<vmem>>, vector<16x256xbf16>
    tpu.vector_store %arg8[%c0_49, %c17_50], %52 {strides = array<i32>} : memref<16x290xbf16, #tpu.memory_space<vmem>>, vector<16x256xbf16>,
    %c0_51 = arith.constant 0 : index
    %c0_52 = arith.constant 0 : index
    %54 = vector.load %arg5[%c0_51, %c0_52] : memref<16x144xbf16, #tpu.memory_space<vmem>>, vector<16x144xbf16>
    %c0_53 = arith.constant 0 : index
    %c0_54 = arith.constant 0 : index
    %55 = vector.load %arg8[%c0_53, %c0_54] : memref<16x290xbf16, #tpu.memory_space<vmem>>, vector<16x256xbf16>
    %c0_55 = arith.constant 0 : index
    %c0_56 = arith.constant 0 : index
    %56 = vector.load %arg2[%c0_55, %c0_56] : memref<3x256xbf16, #tpu.memory_space<vmem>>, vector<1x256xbf16>
    %57 = vector.broadcast %56 : vector<1x256xbf16> to vector<16x256xbf16>
    %58 = arith.mulf %55, %57 : vector<16x256xbf16>
    %c0_57 = arith.constant 0 : index
    %c0_58 = arith.constant 0 : index
    %59 = vector.load %arg9[%c0_57, %c0_58] : memref<144x256xbf16, #tpu.memory_space<vmem>>, vector<16x256xbf16>
    tpu.vector_store %arg9[%c0_57, %c0_58], %58 {strides = array<i32>} : memref<144x256xbf16, #tpu.memory_space<vmem>>, vector<16x256xbf16>,
    %c0_59 = arith.constant 0 : index
    %c1_60 = arith.constant 1 : index
    %60 = vector.load %arg8[%c0_59, %c1_60] : memref<16x290xbf16, #tpu.memory_space<vmem>>, vector<16x256xbf16>
    %c16_61 = arith.constant 16 : index
    %c0_62 = arith.constant 0 : index
    %61 = vector.load %arg9[%c16_61, %c0_62] : memref<144x256xbf16, #tpu.memory_space<vmem>>, vector<16x256xbf16>
    tpu.vector_store %arg9[%c16_61, %c0_62], %60 {strides = array<i32>} : memref<144x256xbf16, #tpu.memory_space<vmem>>, vector<16x256xbf16>,
    %c0_63 = arith.constant 0 : index
    %c2_64 = arith.constant 2 : index
    %62 = vector.load %arg8[%c0_63, %c2_64] : memref<16x290xbf16, #tpu.memory_space<vmem>>, vector<16x256xbf16>
    %c2_65 = arith.constant 2 : index
    %c0_66 = arith.constant 0 : index
    %63 = vector.load %arg2[%c2_65, %c0_66] : memref<3x256xbf16, #tpu.memory_space<vmem>>, vector<1x256xbf16>
    %64 = vector.broadcast %63 : vector<1x256xbf16> to vector<16x256xbf16>
    %65 = arith.mulf %62, %64 : vector<16x256xbf16>
    %c32_67 = arith.constant 32 : index
    %c0_68 = arith.constant 0 : index
    %66 = vector.load %arg9[%c32_67, %c0_68] : memref<144x256xbf16, #tpu.memory_space<vmem>>, vector<16x256xbf16>
    tpu.vector_store %arg9[%c32_67, %c0_68], %65 {strides = array<i32>} : memref<144x256xbf16, #tpu.memory_space<vmem>>, vector<16x256xbf16>,
    %c0_69 = arith.constant 0 : index
    %c16_70 = arith.constant 16 : index
    %67 = vector.load %arg8[%c0_69, %c16_70] : memref<16x290xbf16, #tpu.memory_space<vmem>>, vector<16x256xbf16>
    %c0_71 = arith.constant 0 : index
    %c0_72 = arith.constant 0 : index
    %68 = vector.load %arg2[%c0_71, %c0_72] : memref<3x256xbf16, #tpu.memory_space<vmem>>, vector<1x256xbf16>
    %69 = vector.broadcast %68 : vector<1x256xbf16> to vector<16x256xbf16>
    %70 = arith.mulf %67, %69 : vector<16x256xbf16>
    %c48_73 = arith.constant 48 : index
    %c0_74 = arith.constant 0 : index
    %71 = vector.load %arg9[%c48_73, %c0_74] : memref<144x256xbf16, #tpu.memory_space<vmem>>, vector<16x256xbf16>
    tpu.vector_store %arg9[%c48_73, %c0_74], %70 {strides = array<i32>} : memref<144x256xbf16, #tpu.memory_space<vmem>>, vector<16x256xbf16>,
    %c0_75 = arith.constant 0 : index
    %c17_76 = arith.constant 17 : index
    %72 = vector.load %arg8[%c0_75, %c17_76] : memref<16x290xbf16, #tpu.memory_space<vmem>>, vector<16x256xbf16>
    %c64_77 = arith.constant 64 : index
    %c0_78 = arith.constant 0 : index
    %73 = vector.load %arg9[%c64_77, %c0_78] : memref<144x256xbf16, #tpu.memory_space<vmem>>, vector<16x256xbf16>
    tpu.vector_store %arg9[%c64_77, %c0_78], %72 {strides = array<i32>} : memref<144x256xbf16, #tpu.memory_space<vmem>>, vector<16x256xbf16>,
    %c0_79 = arith.constant 0 : index
    %c18_80 = arith.constant 18 : index
    %74 = vector.load %arg8[%c0_79, %c18_80] : memref<16x290xbf16, #tpu.memory_space<vmem>>, vector<16x256xbf16>
    %c2_81 = arith.constant 2 : index
    %c0_82 = arith.constant 0 : index
    %75 = vector.load %arg2[%c2_81, %c0_82] : memref<3x256xbf16, #tpu.memory_space<vmem>>, vector<1x256xbf16>
    %76 = vector.broadcast %75 : vector<1x256xbf16> to vector<16x256xbf16>
    %77 = arith.mulf %74, %76 : vector<16x256xbf16>
    %c80_83 = arith.constant 80 : index
    %c0_84 = arith.constant 0 : index
    %78 = vector.load %arg9[%c80_83, %c0_84] : memref<144x256xbf16, #tpu.memory_space<vmem>>, vector<16x256xbf16>
    tpu.vector_store %arg9[%c80_83, %c0_84], %77 {strides = array<i32>} : memref<144x256xbf16, #tpu.memory_space<vmem>>, vector<16x256xbf16>,
    %c0_85 = arith.constant 0 : index
    %c32_86 = arith.constant 32 : index
    %79 = vector.load %arg8[%c0_85, %c32_86] : memref<16x290xbf16, #tpu.memory_space<vmem>>, vector<16x256xbf16>
    %c0_87 = arith.constant 0 : index
    %c0_88 = arith.constant 0 : index
    %80 = vector.load %arg2[%c0_87, %c0_88] : memref<3x256xbf16, #tpu.memory_space<vmem>>, vector<1x256xbf16>
    %81 = vector.broadcast %80 : vector<1x256xbf16> to vector<16x256xbf16>
    %82 = arith.mulf %79, %81 : vector<16x256xbf16>
    %c96_89 = arith.constant 96 : index
    %c0_90 = arith.constant 0 : index
    %83 = vector.load %arg9[%c96_89, %c0_90] : memref<144x256xbf16, #tpu.memory_space<vmem>>, vector<16x256xbf16>
    tpu.vector_store %arg9[%c96_89, %c0_90], %82 {strides = array<i32>} : memref<144x256xbf16, #tpu.memory_space<vmem>>, vector<16x256xbf16>,
    %c0_91 = arith.constant 0 : index
    %c33_92 = arith.constant 33 : index
    %84 = vector.load %arg8[%c0_91, %c33_92] : memref<16x290xbf16, #tpu.memory_space<vmem>>, vector<16x256xbf16>
    %c112_93 = arith.constant 112 : index
    %c0_94 = arith.constant 0 : index
    %85 = vector.load %arg9[%c112_93, %c0_94] : memref<144x256xbf16, #tpu.memory_space<vmem>>, vector<16x256xbf16>
    tpu.vector_store %arg9[%c112_93, %c0_94], %84 {strides = array<i32>} : memref<144x256xbf16, #tpu.memory_space<vmem>>, vector<16x256xbf16>,
    %c0_95 = arith.constant 0 : index
    %c34_96 = arith.constant 34 : index
    %86 = vector.load %arg8[%c0_95, %c34_96] : memref<16x290xbf16, #tpu.memory_space<vmem>>, vector<16x256xbf16>
    %c2_97 = arith.constant 2 : index
    %c0_98 = arith.constant 0 : index
    %87 = vector.load %arg2[%c2_97, %c0_98] : memref<3x256xbf16, #tpu.memory_space<vmem>>, vector<1x256xbf16>
    %88 = vector.broadcast %87 : vector<1x256xbf16> to vector<16x256xbf16>
    %89 = arith.mulf %86, %88 : vector<16x256xbf16>
    %c128_99 = arith.constant 128 : index
    %c0_100 = arith.constant 0 : index
    %90 = vector.load %arg9[%c128_99, %c0_100] : memref<144x256xbf16, #tpu.memory_space<vmem>>, vector<16x256xbf16>
    tpu.vector_store %arg9[%c128_99, %c0_100], %89 {strides = array<i32>} : memref<144x256xbf16, #tpu.memory_space<vmem>>, vector<16x256xbf16>,
    %c0_101 = arith.constant 0 : index
    %c0_102 = arith.constant 0 : index
    %91 = vector.load %arg9[%c0_101, %c0_102] : memref<144x256xbf16, #tpu.memory_space<vmem>>, vector<144x256xbf16>
    %cst_103 = arith.constant dense<0.000000e+00> : vector<16x256xf32>
    %92 = tpu.matmul %54, %91, %cst_103 {dimension_numbers = #tpu.dot_dimension_numbers<[1], [0], [0], [1], [0, 0, 1, 1], [], []>} : vector<16x144xbf16>, vector<144x256xbf16>, vector<16x256xf32> -> vector<16x256xf32>
    %c0_104 = arith.constant 0 : index
    %c0_105 = arith.constant 0 : index
    %93 = vector.load %arg6[%c0_104, %c0_105] : memref<16x1xf32, #tpu.memory_space<vmem>>, vector<16x1xf32>
    %94 = vector.broadcast %93 : vector<16x1xf32> to vector<16x256xf32>
    %95 = arith.addf %92, %94 : vector<16x256xf32>
    %cst_106 = arith.constant 1.000000e-01 : f32
    %96 = vector.broadcast %cst_106 : f32 to vector<16x256xf32>
    %97 = arith.mulf %96, %95 : vector<16x256xf32>
    %c0_107 = arith.constant 0 : index
    %c0_108 = arith.constant 0 : index
    %c0_109 = arith.constant 0 : index
    %98 = vector.load %arg1[%c0_107, %c0_108, %c0_109] : memref<1x16x256xf32, #tpu.memory_space<vmem>>, vector<1x16x256xf32>
    %99 = vector.shape_cast %98 : vector<1x16x256xf32> to vector<16x256xf32>
    %100 = arith.addf %97, %99 : vector<16x256xf32>
    %c0_110 = arith.constant 0 : index
    %c0_111 = arith.constant 0 : index
    %c0_112 = arith.constant 0 : index
    %101 = vector.load %arg7[%c0_110, %c0_111, %c0_112] : memref<1x16x256xf32, #tpu.memory_space<vmem>>, vector<1x16x256xf32>
    %102 = vector.shape_cast %101 : vector<1x16x256xf32> to vector<16x256xf32>
    %103 = vector.shape_cast %100 : vector<16x256xf32> to vector<1x16x256xf32>
    tpu.vector_store %arg7[%c0_110, %c0_111, %c0_112], %103 {strides = array<i32>} : memref<1x16x256xf32, #tpu.memory_space<vmem>>, vector<1x16x256xf32>,
    return
  }
  func.func @transform_0(%arg0: i32) -> (i32, i32, i32) {
    %c0_i32 = arith.constant 0 : i32
    %c0_i32_0 = arith.constant 0 : i32
    %c0_i32_1 = arith.constant 0 : i32
    return %arg0, %c0_i32, %c0_i32_0 : i32, i32, i32
  }
  func.func @transform_1(%arg0: i32) -> (i32, i32) {
    %c0_i32 = arith.constant 0 : i32
    %c0_i32_0 = arith.constant 0 : i32
    %c0_i32_1 = arith.constant 0 : i32
    return %c0_i32, %c0_i32_0 : i32, i32
  }
  func.func @transform_2(%arg0: i32) -> (i32, i32) {
    %c0_i32 = arith.constant 0 : i32
    %c0_i32_0 = arith.constant 0 : i32
    %c0_i32_1 = arith.constant 0 : i32
    return %c0_i32, %c0_i32_0 : i32, i32
  }
  func.func @transform_3(%arg0: i32) -> (i32, i32) {
    %c0_i32 = arith.constant 0 : i32
    %c0_i32_0 = arith.constant 0 : i32
    %c0_i32_1 = arith.constant 0 : i32
    return %c0_i32, %c0_i32_0 : i32, i32
  }
  func.func @transform_4(%arg0: i32) -> (i32, i32) {
    %c0_i32 = arith.constant 0 : i32
    %c0_i32_0 = arith.constant 0 : i32
    %c0_i32_1 = arith.constant 0 : i32
    return %c0_i32, %c0_i32_0 : i32, i32
  }
  func.func @transform_5(%arg0: i32) -> (i32, i32) {
    %c0_i32 = arith.constant 0 : i32
    %c0_i32_0 = arith.constant 0 : i32
    %c0_i32_1 = arith.constant 0 : i32
    return %c0_i32, %c0_i32_0 : i32, i32
  }
  func.func @transform_6(%arg0: i32) -> (i32, i32, i32) {
    %c0_i32 = arith.constant 0 : i32
    %c0_i32_0 = arith.constant 0 : i32
    %c0_i32_1 = arith.constant 0 : i32
    return %arg0, %c0_i32, %c0_i32_0 : i32, i32, i32
  }
}

</mosaic_0001>

<llo_original>
// kernel: tpu_custom_call.1
$region0: #{tpu_custom_call.1}
  #allocation0 [shape = 'u32[]', space=smem, size = 0x4, offset = 0x4, fixed_abs, tag = 'smem constant byte address 0x4 - core index']
  #allocation1 [shape = 'u32[144,128]{1,0:T(1,128)}', space=vmem, size = 0x12000, scoped, tag = 'internal scratch']
  #allocation2 [shape = 'bf16[16,290]{1,0:T(16,128)(2,1)}', space=vmem, size = 0x3000, scoped, tag = 'scratch operand']
  #allocation3 [shape = 'bf16[144,256]{1,0:T(16,128)(2,1)}', space=vmem, size = 0x12000, scoped, tag = 'scratch operand']
  %s0 = inlined_call_operand.hbm [shape: f32[2,16,256], index: 0, kind: input, shape index: {}]
  %s1 = inlined_call_operand.vmem [shape: bf16[3,256], index: 1, kind: input, shape index: {}]
  %s2 = inlined_call_operand.vmem [shape: bf16[16,144], index: 2, kind: input, shape index: {}]
  %s3 = inlined_call_operand.vmem [shape: f32[16,1], index: 3, kind: input, shape index: {}]
  %s4 = inlined_call_operand.vmem [shape: bf16[16,144], index: 4, kind: input, shape index: {}]
  %s5 = inlined_call_operand.vmem [shape: f32[16,1], index: 5, kind: input, shape index: {}]
  %s6 = inlined_call_operand.hbm [shape: f32[2,16,256], index: 6, kind: output, shape index: {}]
  %s7 = sld [smem:[#allocation0]]
  $region61: #{tpu_custom_call.1} parent=0
    _
  %s9 = ssub.s32 1, %s7
  %s10 = scalar_select 0, %s9, %s7
  $region1: #{tpu_custom_call.1} parent=0
    #allocation4 [shape = 'u8[32768]{0}', space=vmem, size = 0x8000, scoped, tag = 'input window, operand 0']
    #allocation5 [shape = 's32[2]{0}', space=sflag, size = 0x8, scoped, tag = 'scoped memory for tpu_custom_call.1']
    #allocation6 [shape = 's32[2]{0}', space=sflag, size = 0x8, scoped, tag = 'scoped memory for tpu_custom_call.1']
    #allocation7 [shape = 'u8[32768]{0}', space=vmem, size = 0x8000, scoped, tag = 'output window, operand 0']
    %11 = vsyncpa [#allocation5], 0
    %s12 = scalar_lea.sflag [#allocation5], 1
    %13 = vsyncpa %s12, 0
    %14 = vsyncpa [#allocation6], 0
    %s15 = scalar_lea.sflag [#allocation6], 1
    %16 = vsyncpa %s15, 0
    loop: start=0, step=1, limit=4
    $region2: #{tpu_custom_call.1} parent=1 // loop_pre_header
      _
    $region3: #{tpu_custom_call.1} parent=1 // loop_header
      %s18 = sphi 0, %s22
      %p19 = scmp.ge.s32.totalorder %s18, 4
      %s28 = sphi 0, %s30
      %s31 = sphi 0, %s28
      %s32 = sphi 0, %s31
      %s48 = sphi 0, %s32
      %s52 = sphi 0, %s52
      %s54 = sphi 0, %s52
      %s55 = sphi 0, %s54
      %s69 = sphi 0, %s55
      %s73 = sphi 0, %s73
      %s75 = sphi 0, %s73
      %s76 = sphi 0, %s75
      %s90 = sphi 0, %s76
      %s94 = sphi 0, %s94
      %s96 = sphi 0, %s94
      %s97 = sphi 0, %s96
      %s111 = sphi 0, %s97
      %s115 = sphi 0, %s115
      %s117 = sphi 0, %s115
      %s118 = sphi 0, %s117
      %s132 = sphi 0, %s118
      %s136 = sphi 0, %s136
      %s138 = sphi 0, %s136
      %s139 = sphi 0, %s138
      %s153 = sphi 0, %s139
      %s159 = sphi 0, %s161
      %s162 = sphi 0, %s159
      %s163 = sphi 0, %s162
      %s179 = sphi 0, %s163
    $region4: #{tpu_custom_call.1} parent=1 // loop_header_branch
      %21 = sbr.rel (%p19) target = $region8
    $region5: #{tpu_custom_call.1} parent=1 // loop_body
      %s23 = ssub.s32 %s18, 1
      %s24 = ssub.s32 %s18, 2
      %s25 = sadd.s32 %s18, 1
      %s26 = ssub.s32 %s18, %s25
      %p27 = scmp.eq.s32.totalorder %s26, 0
      %s29 = sadd.s32 %s28, 1
      %s30 = scalar_select %p27, %s28, %s29
      %p33 = pneg %p27
      %p34 = scmp.eq.s32.totalorder %s18, 1
      %p35 = por %p33, %p34
      %p36 = scmp.ne.s32.totalorder %s28, %s31
      %p37 = scmp.eq.s32.totalorder %s18, 0
      %p38 = por %p36, %p37
      %p39 = scmp.ne.s32.totalorder %s28, %s31
      %p40 = scmp.eq.s32.totalorder %s23, 1
      %p41 = por %p39, %p40
      %p42 = scmp.ne.s32.totalorder %s31, %s32
      %p43 = scmp.eq.s32.totalorder %s23, 0
      %p44 = por %p42, %p43
      %p45 = scmp.ne.s32.totalorder %s31, %s32
      %p46 = scmp.eq.s32.totalorder %s24, 1
      %p47 = por %p45, %p46
      %p49 = scmp.ne.s32.totalorder %s32, %s48
      %p50 = scmp.eq.s32.totalorder %s24, 0
      %p51 = por %p49, %p50
      %s53 = sadd.s32 %s52, 1
      %p56 = scmp.eq.s32.totalorder %s18, 1
      %p57 = scmp.ne.s32.totalorder %s52, %s54
      %p58 = scmp.eq.s32.totalorder %s18, 0
      %p59 = por %p57, %p58
      %p60 = scmp.ne.s32.totalorder %s52, %s54
      %p61 = scmp.eq.s32.totalorder %s23, 1
      %p62 = por %p60, %p61
      %p63 = scmp.ne.s32.totalorder %s54, %s55
      %p64 = scmp.eq.s32.totalorder %s23, 0
      %p65 = por %p63, %p64
      %p66 = scmp.ne.s32.totalorder %s54, %s55
      %p67 = scmp.eq.s32.totalorder %s24, 1
      %p68 = por %p66, %p67
      %p70 = scmp.ne.s32.totalorder %s55, %s69
      %p71 = scmp.eq.s32.totalorder %s24, 0
      %p72 = por %p70, %p71
      %s74 = sadd.s32 %s73, 1
      %p77 = scmp.eq.s32.totalorder %s18, 1
      %p78 = scmp.ne.s32.totalorder %s73, %s75
      %p79 = scmp.eq.s32.totalorder %s18, 0
      %p80 = por %p78, %p79
      %p81 = scmp.ne.s32.totalorder %s73, %s75
      %p82 = scmp.eq.s32.totalorder %s23, 1
      %p83 = por %p81, %p82
      %p84 = scmp.ne.s32.totalorder %s75, %s76
      %p85 = scmp.eq.s32.totalorder %s23, 0
      %p86 = por %p84, %p85
      %p87 = scmp.ne.s32.totalorder %s75, %s76
      %p88 = scmp.eq.s32.totalorder %s24, 1
      %p89 = por %p87, %p88
      %p91 = scmp.ne.s32.totalorder %s76, %s90
      %p92 = scmp.eq.s32.totalorder %s24, 0
      %p93 = por %p91, %p92
      %s95 = sadd.s32 %s94, 1
      %p98 = scmp.eq.s32.totalorder %s18, 1
      %p99 = scmp.ne.s32.totalorder %s94, %s96
      %p100 = scmp.eq.s32.totalorder %s18, 0
      %p101 = por %p99, %p100
      %p102 = scmp.ne.s32.totalorder %s94, %s96
      %p103 = scmp.eq.s32.totalorder %s23, 1
      %p104 = por %p102, %p103
      %p105 = scmp.ne.s32.totalorder %s96, %s97
      %p106 = scmp.eq.s32.totalorder %s23, 0
      %p107 = por %p105, %p106
      %p108 = scmp.ne.s32.totalorder %s96, %s97
      %p109 = scmp.eq.s32.totalorder %s24, 1
      %p110 = por %p108, %p109
      %p112 = scmp.ne.s32.totalorder %s97, %s111
      %p113 = scmp.eq.s32.totalorder %s24, 0
      %p114 = por %p112, %p113
      %s116 = sadd.s32 %s115, 1
      %p119 = scmp.eq.s32.totalorder %s18, 1
      %p120 = scmp.ne.s32.totalorder %s115, %s117
      %p121 = scmp.eq.s32.totalorder %s18, 0
      %p122 = por %p120, %p121
      %p123 = scmp.ne.s32.totalorder %s115, %s117
      %p124 = scmp.eq.s32.totalorder %s23, 1
      %p125 = por %p123, %p124
      %p126 = scmp.ne.s32.totalorder %s117, %s118
      %p127 = scmp.eq.s32.totalorder %s23, 0
      %p128 = por %p126, %p127
      %p129 = scmp.ne.s32.totalorder %s117, %s118
      %p130 = scmp.eq.s32.totalorder %s24, 1
      %p131 = por %p129, %p130
      %p133 = scmp.ne.s32.totalorder %s118, %s132
      %p134 = scmp.eq.s32.totalorder %s24, 0
      %p135 = por %p133, %p134
      %s137 = sadd.s32 %s136, 1
      %p140 = scmp.eq.s32.totalorder %s18, 1
      %p141 = scmp.ne.s32.totalorder %s136, %s138
      %p142 = scmp.eq.s32.totalorder %s18, 0
      %p143 = por %p141, %p142
      %p144 = scmp.ne.s32.totalorder %s136, %s138
      %p145 = scmp.eq.s32.totalorder %s23, 1
      %p146 = por %p144, %p145
      %p147 = scmp.ne.s32.totalorder %s138, %s139
      %p148 = scmp.eq.s32.totalorder %s23, 0
      %p149 = por %p147, %p148
      %p150 = scmp.ne.s32.totalorder %s138, %s139
      %p151 = scmp.eq.s32.totalorder %s24, 1
      %p152 = por %p150, %p151
      %p154 = scmp.ne.s32.totalorder %s139, %s153
      %p155 = scmp.eq.s32.totalorder %s24, 0
      %p156 = por %p154, %p155
      %s157 = ssub.s32 %s18, %s25
      %p158 = scmp.eq.s32.totalorder %s157, 0
      %s160 = sadd.s32 %s159, 1
      %s161 = scalar_select %p158, %s159, %s160
      %p164 = pneg %p158
      %p165 = scmp.eq.s32.totalorder %s18, 1
      %p166 = por %p164, %p165
      %p167 = scmp.ne.s32.totalorder %s159, %s162
      %p168 = scmp.eq.s32.totalorder %s18, 0
      %p169 = por %p167, %p168
      %p170 = scmp.ne.s32.totalorder %s159, %s162
      %p171 = scmp.eq.s32.totalorder %s23, 1
      %p172 = por %p170, %p171
      %p173 = scmp.ne.s32.totalorder %s162, %s163
      %p174 = scmp.eq.s32.totalorder %s23, 0
      %p175 = por %p173, %p174
      %p176 = scmp.ne.s32.totalorder %s162, %s163
      %p177 = scmp.eq.s32.totalorder %s24, 1
      %p178 = por %p176, %p177
      %p180 = scmp.ne.s32.totalorder %s163, %s179
      %p181 = scmp.eq.s32.totalorder %s24, 0
      %p182 = por %p180, %p181
      %p183 = scmp.le.s32.totalorder 1, %s18
      %p184 = scmp.lt.s32.totalorder %s18, 3
      %p185 = pnand %p183, %p184
      %p186 = pneg %p185
      // Predicated region
      $region9: #{tpu_custom_call.1} parent=5 // pred_check
        _
      $region10: #{tpu_custom_call.1} parent=5 // pred_check_branch
        %188 = sbr.rel (%p185) target = $region12
      $region11: #{tpu_custom_call.1} parent=5 // pred_region
        %s189 = ssub.s32 %s18, 1
        // Predicated region
        $region13: #{tpu_custom_call.1} parent=11 // pred_check
          %p190 = pneg %p65
        $region14: #{tpu_custom_call.1} parent=11 // pred_check_branch
          %192 = sbr.rel (%p190) target = $region16
        $region15: #{tpu_custom_call.1} parent=11 // pred_region
          _
        $region16: #{tpu_custom_call.1} parent=11 // pred_fallthru
          _
        // Predicated region
        $region17: #{tpu_custom_call.1} parent=11 // pred_check
          %p193 = pneg %p86
        $region18: #{tpu_custom_call.1} parent=11 // pred_check_branch
          %195 = sbr.rel (%p193) target = $region20
        $region19: #{tpu_custom_call.1} parent=11 // pred_region
          _
        $region20: #{tpu_custom_call.1} parent=11 // pred_fallthru
          _
        // Predicated region
        $region21: #{tpu_custom_call.1} parent=11 // pred_check
          %p196 = pneg %p107
        $region22: #{tpu_custom_call.1} parent=11 // pred_check_branch
          %198 = sbr.rel (%p196) target = $region24
        $region23: #{tpu_custom_call.1} parent=11 // pred_region
          _
        $region24: #{tpu_custom_call.1} parent=11 // pred_fallthru
          _
        // Predicated region
        $region25: #{tpu_custom_call.1} parent=11 // pred_check
          %p199 = pneg %p128
        $region26: #{tpu_custom_call.1} parent=11 // pred_check_branch
          %201 = sbr.rel (%p199) target = $region28
        $region27: #{tpu_custom_call.1} parent=11 // pred_region
          _
        $region28: #{tpu_custom_call.1} parent=11 // pred_fallthru
          _
        // Predicated region
        $region29: #{tpu_custom_call.1} parent=11 // pred_check
          %p202 = pneg %p149
        $region30: #{tpu_custom_call.1} parent=11 // pred_check_branch
          %204 = sbr.rel (%p202) target = $region32
        $region31: #{tpu_custom_call.1} parent=11 // pred_region
          _
        $region32: #{tpu_custom_call.1} parent=11 // pred_fallthru
          _
      $region12: #{tpu_custom_call.1} parent=5 // pred_fallthru
        _
      %p205 = scmp.lt.s32.totalorder %s18, 2
      // Predicated region
      $region33: #{tpu_custom_call.1} parent=5 // pred_check
        %p206 = pneg %p205
      $region34: #{tpu_custom_call.1} parent=5 // pred_check_branch
        %208 = sbr.rel (%p206) target = $region36
      $region35: #{tpu_custom_call.1} parent=5 // pred_region
        // Predicated region
        $region37: #{tpu_custom_call.1} parent=35 // pred_check
          %p209 = pneg %p38
        $region38: #{tpu_custom_call.1} parent=35 // pred_check_branch
          %211 = sbr.rel (%p209) target = $region40
        $region39: #{tpu_custom_call.1} parent=35 // pred_region
          %s212 = sand.u32 %s28, 1
          %s213 = scalar_lea.sflag [#allocation5], %s212
          %s214 = sand.u32 %s28, 1
          %s215 = smul.addr %s214, 32
          %s216 = scalar_lea.vmem [#allocation4], %s215
          %s218 = ssub.s32 512, 512
          %219 = vsyncadd %s213, %s218
          %s220 = smul.addr %s18, 4
          %s221 = smul.addr %s220, 128
          %s222 = scalar_lea.hbm %s0, %s221
          %s223 = sshll.u32 %s216, 4
          %s224 = int_to_ptr.vmem [resolvable:$true] %s223
          %229 = dma.hbm_to_vmem [thread:$0]  %s222, 512, %s224, %s213, 256, 256, 16
        $region40: #{tpu_custom_call.1} parent=35 // pred_fallthru
          _
      $region36: #{tpu_custom_call.1} parent=5 // pred_fallthru
        _
      %p230 = scmp.le.s32.totalorder 1, %s18
      %p231 = scmp.lt.s32.totalorder %s18, 3
      %p232 = pnand %p230, %p231
      %p233 = pneg %p232
      // Predicated region
      $region41: #{tpu_custom_call.1} parent=5 // pred_check
        _
      $region42: #{tpu_custom_call.1} parent=5 // pred_check_branch
        %235 = sbr.rel (%p232) target = $region44
      $region43: #{tpu_custom_call.1} parent=5 // pred_region
        %s236 = ssub.s32 %s18, 1
        %s237 = sand.u32 %s31, 1
        %s238 = scalar_lea.sflag [#allocation5], %s237
        %s239 = sand.u32 %s31, 1
        %s240 = smul.addr %s239, 32
        %s241 = scalar_lea.vmem [#allocation4], %s240
        // Predicated region
        $region45: #{tpu_custom_call.1} parent=43 // pred_check
          %p242 = pneg %p44
        $region46: #{tpu_custom_call.1} parent=43 // pred_check_branch
          %244 = sbr.rel (%p242) target = $region48
        $region47: #{tpu_custom_call.1} parent=43 // pred_region
          %245 = dma.done %s238, 512
        $region48: #{tpu_custom_call.1} parent=43 // pred_fallthru
          _
        %s246 = sand.u32 %s31, 1
        %s247 = scalar_lea.sflag [#allocation5], %s246
        %s248 = sand.u32 %s31, 1
        %s249 = smul.addr %s248, 32
        %s250 = scalar_lea.vmem [#allocation4], %s249
        %p251 = pneg %p44
        %p252 = pneg %p41
        %p253 = pneg %p65
        %p254 = pneg %p62
        %p255 = pneg %p86
        %p256 = pneg %p83
        %p257 = pneg %p107
        %p258 = pneg %p104
        %p259 = pneg %p128
        %p260 = pneg %p125
        %p261 = pneg %p149
        %p262 = pneg %p146
        %p263 = pneg %p175
        %p264 = pneg %p172
        %s265 = sand.u32 %s162, 1
        %s266 = scalar_lea.sflag [#allocation6], %s265
        %s267 = sand.u32 %s162, 1
        %s268 = smul.addr %s267, 32
        %s269 = scalar_lea.vmem [#allocation7], %s268
        %vm271 = vcmask 138240
        %272 = vst.msk [vmem:[#allocation2] sm:$0xff] %vm271, 0
        %vm273 = vcmask 277640
        %274 = vst.msk [vmem:[#allocation2 + $0x10] sm:$0xff] %vm273, 0
        %v275 = vld [vmem:[%s241] sm:$0xff]
        %v276 = vld [vmem:[%s241 + $0x8] sm:$0xff]
        %v277 = vld [vmem:[%s241 + $0x10] sm:$0xff]
        %v278 = vld [vmem:[%s241 + $0x18] sm:$0xff]
        %v279 = vpack.c.bf16 %v277, %v275
        %v280 = vpack.c.bf16 %v278, %v276
        %283 = vrot.lane.b32.xlu0 %v279, 17
        %v284 = vpop.permute.xlu0 %283
        %285 = vrot.lane.b32.xlu0 %v280, 17
        %v286 = vpop.permute.xlu0 %285
        %vm287 = vcmask 138240
        %v288 = vsel %vm287, %v284, %v286
        %vm292 = vcmask 1047688
        %293 = vst.msk [vmem:[#allocation2] sm:$0xff] %vm292, %v284
        %294 = vst [vmem:[#allocation2 + $0x8] sm:$0xff] %v288
        %295 = vst.msk [vmem:[#allocation2 + $0x10] sm:$0xff] %vm271, %v286
        %v296 = vld [vmem:[%s2] sm:$0xff]
        %v297 = vld [vmem:[%s2 + $0x8] sm:$0xff]
        %v298 = vld [vmem:[#allocation2] sm:$0xff]
        %v299 = vld [vmem:[#allocation2 + $0x8] sm:$0xff]
        %v300 = vld [vmem:[%s1] sm:$0x5]
        %v303 = vunpack.c.l.s4 1983009808
        %v304 = vunpack.c.0.s8 %v303
        %v305 = vlaneseq
        %v306 = vshrl.u32 %v305, 7
        %v307 = vsub.s32 %v304, %v306
        %v308 = vrot.slane %v300, %v307
        %v309 = vcombine.high %v308, %v308
        %v311 = vpack.i.b16 %v308, %v308
        %v313 = vlaneseq
        %v314 = vshrl.u32 %v313, 7
        %v315 = vsub.s32 0, %v314
        %v316 = vrot.slane %v311, %v315
        %v318 = vpack.i.b16 %v309, %v309
        %v320 = vlaneseq
        %v321 = vshrl.u32 %v320, 7
        %v322 = vsub.s32 0, %v321
        %v323 = vrot.slane %v318, %v322
        %v324 = vmul.bf16 %v298, %v316
        %v325 = vmul.bf16 %v299, %v323
        %326 = vst [vmem:[#allocation3] sm:$0xff] %v324
        %327 = vst [vmem:[#allocation3 + $0x8] sm:$0xff] %v325
        %v328 = vld [vmem:[#allocation2] sm:$0xff]
        %v329 = vld [vmem:[#allocation2 + $0x8] sm:$0xff]
        %v330 = vld [vmem:[#allocation2 + $0x10] sm:$0xff]
        %334 = vrot.lane.b32.xlu0 %v328, 127
        %v335 = vpop.permute.xlu0 %334
        %336 = vrot.lane.b32.xlu0 %v329, 127
        %v337 = vpop.permute.xlu0 %336
        %338 = vrot.lane.b32.xlu0 %v330, 127
        %v339 = vpop.permute.xlu0 %338
        %vm340 = vcmask 1039360
        %v341 = vsel %vm340, %v335, %v337
        %v342 = vsel %vm340, %v337, %v339
        %345 = vst [vmem:[#allocation3 + $0x10] sm:$0xff] %v341
        %346 = vst [vmem:[#allocation3 + $0x18] sm:$0xff] %v342
        %v347 = vld [vmem:[#allocation2] sm:$0xff]
        %v348 = vld [vmem:[#allocation2 + $0x8] sm:$0xff]
        %v349 = vld [vmem:[#allocation2 + $0x10] sm:$0xff]
        %v350 = vld [vmem:[%s1] sm:$0xa]
        %v353 = vunpack.c.l.s4 1983009808
        %v354 = vunpack.c.0.s8 %v353
        %v355 = vlaneseq
        %v356 = vshrl.u32 %v355, 7
        %v357 = vsub.s32 %v354, %v356
        %v358 = vrot.slane %v350, %v357
        %v359 = vcombine.high %v358, %v358
        %v361 = vpack.i.b16 %v358, %v358
        %v363 = vlaneseq
        %v364 = vshrl.u32 %v363, 7
        %v365 = vsub.s32 1, %v364
        %v366 = vrot.slane %v361, %v365
        %v368 = vpack.i.b16 %v359, %v359
        %v370 = vlaneseq
        %v371 = vshrl.u32 %v370, 7
        %v372 = vsub.s32 1, %v371
        %v373 = vrot.slane %v368, %v372
        %376 = vrot.lane.b32.xlu0 %v366, 2
        %v377 = vpop.permute.xlu0 %376
        %378 = vrot.lane.b32.xlu0 %v373, 2
        %v379 = vpop.permute.xlu0 %378
        %vm380 = vcmask 15360
        %v381 = vsel %vm380, %v377, %v379
        %v385 = vmul.bf16 %v347, %v377
        %v386 = vmul.bf16 %v348, %v381
        %v387 = vmul.bf16 %v349, %v379
        %391 = vrot.lane.b32.xlu0 %v385, 126
        %v392 = vpop.permute.xlu0 %391
        %393 = vrot.lane.b32.xlu0 %v386, 126
        %v394 = vpop.permute.xlu0 %393
        %395 = vrot.lane.b32.xlu0 %v387, 126
        %v396 = vpop.permute.xlu0 %395
        %vm397 = vcmask 1031168
        %v398 = vsel %vm397, %v392, %v394
        %v399 = vsel %vm397, %v394, %v396
        %402 = vst [vmem:[#allocation3 + $0x20] sm:$0xff] %v398
        %403 = vst [vmem:[#allocation3 + $0x28] sm:$0xff] %v399
        %v404 = vld [vmem:[#allocation2] sm:$0xff]
        %v405 = vld [vmem:[#allocation2 + $0x8] sm:$0xff]
        %v406 = vld [vmem:[#allocation2 + $0x10] sm:$0xff]
        %v407 = vld [vmem:[%s1] sm:$0x5]
        %v410 = vunpack.c.l.s4 1983009808
        %v411 = vunpack.c.0.s8 %v410
        %v412 = vlaneseq
        %v413 = vshrl.u32 %v412, 7
        %v414 = vsub.s32 %v411, %v413
        %v415 = vrot.slane %v407, %v414
        %v416 = vcombine.high %v415, %v415
        %v418 = vpack.i.b16 %v415, %v415
        %v420 = vlaneseq
        %v421 = vshrl.u32 %v420, 7
        %v422 = vsub.s32 0, %v421
        %v423 = vrot.slane %v418, %v422
        %v425 = vpack.i.b16 %v416, %v416
        %v427 = vlaneseq
        %v428 = vshrl.u32 %v427, 7
        %v429 = vsub.s32 0, %v428
        %v430 = vrot.slane %v425, %v429
        %433 = vrot.lane.b32.xlu0 %v423, 16
        %v434 = vpop.permute.xlu0 %433
        %435 = vrot.lane.b32.xlu0 %v430, 16
        %v436 = vpop.permute.xlu0 %435
        %vm437 = vcmask 130048
        %v438 = vsel %vm437, %v434, %v436
        %v442 = vmul.bf16 %v404, %v434
        %v443 = vmul.bf16 %v405, %v438
        %v444 = vmul.bf16 %v406, %v436
        %448 = vrot.lane.b32.xlu0 %v442, 112
        %v449 = vpop.permute.xlu0 %448
        %450 = vrot.lane.b32.xlu0 %v443, 112
        %v451 = vpop.permute.xlu0 %450
        %452 = vrot.lane.b32.xlu0 %v444, 112
        %v453 = vpop.permute.xlu0 %452
        %vm454 = vcmask 916480
        %v455 = vsel %vm454, %v449, %v451
        %v456 = vsel %vm454, %v451, %v453
        %459 = vst [vmem:[#allocation3 + $0x30] sm:$0xff] %v455
        %460 = vst [vmem:[#allocation3 + $0x38] sm:$0xff] %v456
        %v461 = vld [vmem:[#allocation2] sm:$0xff]
        %v462 = vld [vmem:[#allocation2 + $0x8] sm:$0xff]
        %v463 = vld [vmem:[#allocation2 + $0x10] sm:$0xff]
        %467 = vrot.lane.b32.xlu0 %v461, 111
        %v468 = vpop.permute.xlu0 %467
        %469 = vrot.lane.b32.xlu0 %v462, 111
        %v470 = vpop.permute.xlu0 %469
        %471 = vrot.lane.b32.xlu0 %v463, 111
        %v472 = vpop.permute.xlu0 %471
        %vm473 = vcmask 908288
        %v474 = vsel %vm473, %v468, %v470
        %v475 = vsel %vm473, %v470, %v472
        %478 = vst [vmem:[#allocation3 + $0x40] sm:$0xff] %v474
        %479 = vst [vmem:[#allocation3 + $0x48] sm:$0xff] %v475
        %v480 = vld [vmem:[#allocation2] sm:$0xff]
        %v481 = vld [vmem:[#allocation2 + $0x8] sm:$0xff]
        %v482 = vld [vmem:[#allocation2 + $0x10] sm:$0xff]
        %v483 = vld [vmem:[%s1] sm:$0xa]
        %v486 = vunpack.c.l.s4 1983009808
        %v487 = vunpack.c.0.s8 %v486
        %v488 = vlaneseq
        %v489 = vshrl.u32 %v488, 7
        %v490 = vsub.s32 %v487, %v489
        %v491 = vrot.slane %v483, %v490
        %v492 = vcombine.high %v491, %v491
        %v494 = vpack.i.b16 %v491, %v491
        %v496 = vlaneseq
        %v497 = vshrl.u32 %v496, 7
        %v498 = vsub.s32 1, %v497
        %v499 = vrot.slane %v494, %v498
        %v501 = vpack.i.b16 %v492, %v492
        %v503 = vlaneseq
        %v504 = vshrl.u32 %v503, 7
        %v505 = vsub.s32 1, %v504
        %v506 = vrot.slane %v501, %v505
        %509 = vrot.lane.b32.xlu0 %v499, 18
        %v510 = vpop.permute.xlu0 %509
        %511 = vrot.lane.b32.xlu0 %v506, 18
        %v512 = vpop.permute.xlu0 %511
        %vm513 = vcmask 146432
        %v514 = vsel %vm513, %v510, %v512
        %v518 = vmul.bf16 %v480, %v510
        %v519 = vmul.bf16 %v481, %v514
        %v520 = vmul.bf16 %v482, %v512
        %524 = vrot.lane.b32.xlu0 %v518, 110
        %v525 = vpop.permute.xlu0 %524
        %526 = vrot.lane.b32.xlu0 %v519, 110
        %v527 = vpop.permute.xlu0 %526
        %528 = vrot.lane.b32.xlu0 %v520, 110
        %v529 = vpop.permute.xlu0 %528
        %vm530 = vcmask 900096
        %v531 = vsel %vm530, %v525, %v527
        %v532 = vsel %vm530, %v527, %v529
        %535 = vst [vmem:[#allocation3 + $0x50] sm:$0xff] %v531
        %536 = vst [vmem:[#allocation3 + $0x58] sm:$0xff] %v532
        %v537 = vld [vmem:[#allocation2] sm:$0xff]
        %v538 = vld [vmem:[#allocation2 + $0x8] sm:$0xff]
        %v539 = vld [vmem:[#allocation2 + $0x10] sm:$0xff]
        %v540 = vld [vmem:[%s1] sm:$0x5]
        %v543 = vunpack.c.l.s4 1983009808
        %v544 = vunpack.c.0.s8 %v543
        %v545 = vlaneseq
        %v546 = vshrl.u32 %v545, 7
        %v547 = vsub.s32 %v544, %v546
        %v548 = vrot.slane %v540, %v547
        %v549 = vcombine.high %v548, %v548
        %v551 = vpack.i.b16 %v548, %v548
        %v553 = vlaneseq
        %v554 = vshrl.u32 %v553, 7
        %v555 = vsub.s32 0, %v554
        %v556 = vrot.slane %v551, %v555
        %v558 = vpack.i.b16 %v549, %v549
        %v560 = vlaneseq
        %v561 = vshrl.u32 %v560, 7
        %v562 = vsub.s32 0, %v561
        %v563 = vrot.slane %v558, %v562
        %566 = vrot.lane.b32.xlu0 %v556, 32
        %v567 = vpop.permute.xlu0 %566
        %568 = vrot.lane.b32.xlu0 %v563, 32
        %v569 = vpop.permute.xlu0 %568
        %vm570 = vcmask 261120
        %v571 = vsel %vm570, %v567, %v569
        %v575 = vmul.bf16 %v537, %v567
        %v576 = vmul.bf16 %v538, %v571
        %v577 = vmul.bf16 %v539, %v569
        %581 = vrot.lane.b32.xlu0 %v575, 96
        %v582 = vpop.permute.xlu0 %581
        %583 = vrot.lane.b32.xlu0 %v576, 96
        %v584 = vpop.permute.xlu0 %583
        %585 = vrot.lane.b32.xlu0 %v577, 96
        %v586 = vpop.permute.xlu0 %585
        %vm587 = vcmask 785408
        %v588 = vsel %vm587, %v582, %v584
        %v589 = vsel %vm587, %v584, %v586
        %592 = vst [vmem:[#allocation3 + $0x60] sm:$0xff] %v588
        %593 = vst [vmem:[#allocation3 + $0x68] sm:$0xff] %v589
        %v594 = vld [vmem:[#allocation2] sm:$0xff]
        %v595 = vld [vmem:[#allocation2 + $0x8] sm:$0xff]
        %v596 = vld [vmem:[#allocation2 + $0x10] sm:$0xff]
        %600 = vrot.lane.b32.xlu0 %v594, 95
        %v601 = vpop.permute.xlu0 %600
        %602 = vrot.lane.b32.xlu0 %v595, 95
        %v603 = vpop.permute.xlu0 %602
        %604 = vrot.lane.b32.xlu0 %v596, 95
        %v605 = vpop.permute.xlu0 %604
        %vm606 = vcmask 777216
        %v607 = vsel %vm606, %v601, %v603
        %v608 = vsel %vm606, %v603, %v605
        %611 = vst [vmem:[#allocation3 + $0x70] sm:$0xff] %v607
        %612 = vst [vmem:[#allocation3 + $0x78] sm:$0xff] %v608
        %v613 = vld [vmem:[#allocation2] sm:$0xff]
        %v614 = vld [vmem:[#allocation2 + $0x8] sm:$0xff]
        %v615 = vld [vmem:[#allocation2 + $0x10] sm:$0xff]
        %v616 = vld [vmem:[%s1] sm:$0xa]
        %v619 = vunpack.c.l.s4 1983009808
        %v620 = vunpack.c.0.s8 %v619
        %v621 = vlaneseq
        %v622 = vshrl.u32 %v621, 7
        %v623 = vsub.s32 %v620, %v622
        %v624 = vrot.slane %v616, %v623
        %v625 = vcombine.high %v624, %v624
        %v627 = vpack.i.b16 %v624, %v624
        %v629 = vlaneseq
        %v630 = vshrl.u32 %v629, 7
        %v631 = vsub.s32 1, %v630
        %v632 = vrot.slane %v627, %v631
        %v634 = vpack.i.b16 %v625, %v625
        %v636 = vlaneseq
        %v637 = vshrl.u32 %v636, 7
        %v638 = vsub.s32 1, %v637
        %v639 = vrot.slane %v634, %v638
        %642 = vrot.lane.b32.xlu0 %v632, 34
        %v643 = vpop.permute.xlu0 %642
        %644 = vrot.lane.b32.xlu0 %v639, 34
        %v645 = vpop.permute.xlu0 %644
        %vm646 = vcmask 277504
        %v647 = vsel %vm646, %v643, %v645
        %v651 = vmul.bf16 %v613, %v643
        %v652 = vmul.bf16 %v614, %v647
        %v653 = vmul.bf16 %v615, %v645
        %657 = vrot.lane.b32.xlu0 %v651, 94
        %v658 = vpop.permute.xlu0 %657
        %659 = vrot.lane.b32.xlu0 %v652, 94
        %v660 = vpop.permute.xlu0 %659
        %661 = vrot.lane.b32.xlu0 %v653, 94
        %v662 = vpop.permute.xlu0 %661
        %vm663 = vcmask 769024
        %v664 = vsel %vm663, %v658, %v660
        %v665 = vsel %vm663, %v660, %v662
        %668 = vst [vmem:[#allocation3 + $0x80] sm:$0xff] %v664
        %669 = vst [vmem:[#allocation3 + $0x88] sm:$0xff] %v665
        %v670 = vld [vmem:[#allocation3] sm:$0xff]
        %v671 = vld [vmem:[#allocation3 + $0x8] sm:$0xff]
        %v672 = vld [vmem:[#allocation3 + $0x10] sm:$0xff]
        %v673 = vld [vmem:[#allocation3 + $0x18] sm:$0xff]
        %v674 = vld [vmem:[#allocation3 + $0x20] sm:$0xff]
        %v675 = vld [vmem:[#allocation3 + $0x28] sm:$0xff]
        %v676 = vld [vmem:[#allocation3 + $0x30] sm:$0xff]
        %v677 = vld [vmem:[#allocation3 + $0x38] sm:$0xff]
        %v678 = vld [vmem:[#allocation3 + $0x40] sm:$0xff]
        %v679 = vld [vmem:[#allocation3 + $0x48] sm:$0xff]
        %v680 = vld [vmem:[#allocation3 + $0x50] sm:$0xff]
        %v681 = vld [vmem:[#allocation3 + $0x58] sm:$0xff]
        %v682 = vld [vmem:[#allocation3 + $0x60] sm:$0xff]
        %v683 = vld [vmem:[#allocation3 + $0x68] sm:$0xff]
        %v684 = vld [vmem:[#allocation3 + $0x70] sm:$0xff]
        %v685 = vld [vmem:[#allocation3 + $0x78] sm:$0xff]
        %v686 = vld [vmem:[#allocation3 + $0x80] sm:$0xff]
        %v687 = vld [vmem:[#allocation3 + $0x88] sm:$0xff]
        %v688 = vld [vmem:[%s3] sm:$0xff]
        %v689 = vld [vmem:[%s3 + $0x8] sm:$0xff]
        %691 = vset.pattern.permute.xlu0 0
        %692 = vperm.xlu0 %691, %v688
        %v693 = vpop.permute.xlu0 %692
        %696 = vset.pattern.permute.xlu0 0
        %697 = vperm.xlu0 %696, %v689
        %v698 = vpop.permute.xlu0 %697
        %v702 = vunpack.c.l.b16 %v296
        %v703 = vunpack.c.h.b16 %v296
        %v704 = vunpack.c.l.b16 %v297
        %v705 = vunpack.c.h.b16 %v297
        %v706 = vpack.c.b16 %v704, %v702
        %v707 = vpack.c.b16 %v705, %v703
        %vm709 = vcmask 130048
        %v711 = vsel %vm709, %v707, 0
        %713 = vmatprep.subr.bf16.mxu0 %v671
        %714 = vmatpush1.bf16.msra.mxu0 %v670
        %715 = vmatprep.subr.bf16.mxu0 %v673
        %716 = vmatpush1.bf16.msra.mxu0 %v672
        %717 = vmatprep.subr.bf16.mxu0 %v675
        %718 = vmatpush1.bf16.msra.mxu0 %v674
        %719 = vmatprep.subr.bf16.mxu0 %v677
        %720 = vmatpush1.bf16.msra.mxu0 %v676
        %721 = vmatprep.subr.bf16.mxu0 %v679
        %722 = vmatpush1.bf16.msra.mxu0 %v678
        %723 = vmatprep.subr.bf16.mxu0 %v681
        %724 = vmatpush1.bf16.msra.mxu0 %v680
        %725 = vmatprep.subr.bf16.mxu0 %v683
        %726 = vmatpush1.bf16.msra.mxu0 %v682
        %727 = vmatprep.subr.bf16.mxu0 %v685
        %728 = vmatpush1.bf16.msra.mxu0 %v684
        %729 = vmatprep.subr.bf16.mxu0 %v687
        %730 = vmatpush1.bf16.msra.mxu0 %v686
        %731 = vmatprep.subr.bf16.mxu0 0
        %732 = vmatpush1.bf16.msra.mxu0 0
        %733 = vmatprep.subr.bf16.mxu0 0
        %734 = vmatpush1.bf16.msra.mxu0 0
        %735 = vmatprep.subr.bf16.mxu0 0
        %736 = vmatpush1.bf16.msra.mxu0 0
        %737 = vmatprep.subr.bf16.mxu0 0
        %738 = vmatpush1.bf16.msra.mxu0 0
        %739 = vmatprep.subr.bf16.mxu0 0
        %740 = vmatpush1.bf16.msra.mxu0 0
        %741 = vmatprep.subr.bf16.mxu0 0
        %742 = vmatpush1.bf16.msra.mxu0 0
        %743 = vmatprep.subr.bf16.mxu0 0
        %744 = vmatpush1.bf16.msra.mxu0 0
        %745 = vmatprep.mubr.bf16.mxu0 %v711
        %746 = vmatmul.mubr.bf16.gmra.mrb[0].mxu0 %v706
        %v747 = vpop.f32.mrb[0].mxu0
        %v748 = vadd.f32 %v693, %v747
        %v749 = vpop.f32.mrb[0].mxu0
        %v750 = vadd.f32 %v693, %v749
        %v751 = vpop.f32.mrb[0].mxu0
        %v752 = vadd.f32 %v698, %v751
        %v753 = vpop.f32.mrb[0].mxu0
        %v754 = vadd.f32 %v698, %v753
        %755 = vdwg.mxu0
        %v756 = vmul.f32 %v748, 0.2
        %v757 = vmul.f32 %v750, 0.2
        %v758 = vmul.f32 %v752, 0.2
        %v759 = vmul.f32 %v754, 0.2
        %v760 = vmax.f32 %v748, %v756
        %v761 = vmax.f32 %v750, %v757
        %v762 = vmax.f32 %v752, %v758
        %v763 = vmax.f32 %v754, %v759
        %v764 = vpack.c.bf16 %v762, %v760
        %v765 = vpack.c.bf16 %v763, %v761
        %768 = vrot.lane.b32.xlu0 %v764, 17
        %v769 = vpop.permute.xlu0 %768
        %770 = vrot.lane.b32.xlu0 %v765, 17
        %v771 = vpop.permute.xlu0 %770
        %v772 = vsel %vm287, %v769, %v771
        %776 = vst.msk [vmem:[#allocation2] sm:$0xff] %vm292, %v769
        %777 = vst [vmem:[#allocation2 + $0x8] sm:$0xff] %v772
        %778 = vst.msk [vmem:[#allocation2 + $0x10] sm:$0xff] %vm271, %v771
        %v779 = vld [vmem:[%s4] sm:$0xff]
        %v780 = vld [vmem:[%s4 + $0x8] sm:$0xff]
        %v781 = vld [vmem:[#allocation2] sm:$0xff]
        %v782 = vld [vmem:[#allocation2 + $0x8] sm:$0xff]
        %v783 = vld [vmem:[%s1] sm:$0x5]
        %v786 = vunpack.c.l.s4 1983009808
        %v787 = vunpack.c.0.s8 %v786
        %v788 = vlaneseq
        %v789 = vshrl.u32 %v788, 7
        %v790 = vsub.s32 %v787, %v789
        %v791 = vrot.slane %v783, %v790
        %v792 = vcombine.high %v791, %v791
        %v794 = vpack.i.b16 %v791, %v791
        %v796 = vlaneseq
        %v797 = vshrl.u32 %v796, 7
        %v798 = vsub.s32 0, %v797
        %v799 = vrot.slane %v794, %v798
        %v801 = vpack.i.b16 %v792, %v792
        %v803 = vlaneseq
        %v804 = vshrl.u32 %v803, 7
        %v805 = vsub.s32 0, %v804
        %v806 = vrot.slane %v801, %v805
        %v807 = vmul.bf16 %v781, %v799
        %v808 = vmul.bf16 %v782, %v806
        %809 = vst [vmem:[#allocation3] sm:$0xff] %v807
        %810 = vst [vmem:[#allocation3 + $0x8] sm:$0xff] %v808
        %v811 = vld [vmem:[#allocation2] sm:$0xff]
        %v812 = vld [vmem:[#allocation2 + $0x8] sm:$0xff]
        %v813 = vld [vmem:[#allocation2 + $0x10] sm:$0xff]
        %817 = vrot.lane.b32.xlu0 %v811, 127
        %v818 = vpop.permute.xlu0 %817
        %819 = vrot.lane.b32.xlu0 %v812, 127
        %v820 = vpop.permute.xlu0 %819
        %821 = vrot.lane.b32.xlu0 %v813, 127
        %v822 = vpop.permute.xlu0 %821
        %v823 = vsel %vm340, %v818, %v820
        %v824 = vsel %vm340, %v820, %v822
        %827 = vst [vmem:[#allocation3 + $0x10] sm:$0xff] %v823
        %828 = vst [vmem:[#allocation3 + $0x18] sm:$0xff] %v824
        %v829 = vld [vmem:[#allocation2] sm:$0xff]
        %v830 = vld [vmem:[#allocation2 + $0x8] sm:$0xff]
        %v831 = vld [vmem:[#allocation2 + $0x10] sm:$0xff]
        %v832 = vld [vmem:[%s1] sm:$0xa]
        %v835 = vunpack.c.l.s4 1983009808
        %v836 = vunpack.c.0.s8 %v835
        %v837 = vlaneseq
        %v838 = vshrl.u32 %v837, 7
        %v839 = vsub.s32 %v836, %v838
        %v840 = vrot.slane %v832, %v839
        %v841 = vcombine.high %v840, %v840
        %v843 = vpack.i.b16 %v840, %v840
        %v845 = vlaneseq
        %v846 = vshrl.u32 %v845, 7
        %v847 = vsub.s32 1, %v846
        %v848 = vrot.slane %v843, %v847
        %v850 = vpack.i.b16 %v841, %v841
        %v852 = vlaneseq
        %v853 = vshrl.u32 %v852, 7
        %v854 = vsub.s32 1, %v853
        %v855 = vrot.slane %v850, %v854
        %858 = vrot.lane.b32.xlu0 %v848, 2
        %v859 = vpop.permute.xlu0 %858
        %860 = vrot.lane.b32.xlu0 %v855, 2
        %v861 = vpop.permute.xlu0 %860
        %v862 = vsel %vm380, %v859, %v861
        %v866 = vmul.bf16 %v829, %v859
        %v867 = vmul.bf16 %v830, %v862
        %v868 = vmul.bf16 %v831, %v861
        %872 = vrot.lane.b32.xlu0 %v866, 126
        %v873 = vpop.permute.xlu0 %872
        %874 = vrot.lane.b32.xlu0 %v867, 126
        %v875 = vpop.permute.xlu0 %874
        %876 = vrot.lane.b32.xlu0 %v868, 126
        %v877 = vpop.permute.xlu0 %876
        %v878 = vsel %vm397, %v873, %v875
        %v879 = vsel %vm397, %v875, %v877
        %882 = vst [vmem:[#allocation3 + $0x20] sm:$0xff] %v878
        %883 = vst [vmem:[#allocation3 + $0x28] sm:$0xff] %v879
        %v884 = vld [vmem:[#allocation2] sm:$0xff]
        %v885 = vld [vmem:[#allocation2 + $0x8] sm:$0xff]
        %v886 = vld [vmem:[#allocation2 + $0x10] sm:$0xff]
        %v887 = vld [vmem:[%s1] sm:$0x5]
        %v890 = vunpack.c.l.s4 1983009808
        %v891 = vunpack.c.0.s8 %v890
        %v892 = vlaneseq
        %v893 = vshrl.u32 %v892, 7
        %v894 = vsub.s32 %v891, %v893
        %v895 = vrot.slane %v887, %v894
        %v896 = vcombine.high %v895, %v895
        %v898 = vpack.i.b16 %v895, %v895
        %v900 = vlaneseq
        %v901 = vshrl.u32 %v900, 7
        %v902 = vsub.s32 0, %v901
        %v903 = vrot.slane %v898, %v902
        %v905 = vpack.i.b16 %v896, %v896
        %v907 = vlaneseq
        %v908 = vshrl.u32 %v907, 7
        %v909 = vsub.s32 0, %v908
        %v910 = vrot.slane %v905, %v909
        %913 = vrot.lane.b32.xlu0 %v903, 16
        %v914 = vpop.permute.xlu0 %913
        %915 = vrot.lane.b32.xlu0 %v910, 16
        %v916 = vpop.permute.xlu0 %915
        %v917 = vsel %vm437, %v914, %v916
        %v921 = vmul.bf16 %v884, %v914
        %v922 = vmul.bf16 %v885, %v917
        %v923 = vmul.bf16 %v886, %v916
        %927 = vrot.lane.b32.xlu0 %v921, 112
        %v928 = vpop.permute.xlu0 %927
        %929 = vrot.lane.b32.xlu0 %v922, 112
        %v930 = vpop.permute.xlu0 %929
        %931 = vrot.lane.b32.xlu0 %v923, 112
        %v932 = vpop.permute.xlu0 %931
        %v933 = vsel %vm454, %v928, %v930
        %v934 = vsel %vm454, %v930, %v932
        %937 = vst [vmem:[#allocation3 + $0x30] sm:$0xff] %v933
        %938 = vst [vmem:[#allocation3 + $0x38] sm:$0xff] %v934
        %v939 = vld [vmem:[#allocation2] sm:$0xff]
        %v940 = vld [vmem:[#allocation2 + $0x8] sm:$0xff]
        %v941 = vld [vmem:[#allocation2 + $0x10] sm:$0xff]
        %945 = vrot.lane.b32.xlu0 %v939, 111
        %v946 = vpop.permute.xlu0 %945
        %947 = vrot.lane.b32.xlu0 %v940, 111
        %v948 = vpop.permute.xlu0 %947
        %949 = vrot.lane.b32.xlu0 %v941, 111
        %v950 = vpop.permute.xlu0 %949
        %v951 = vsel %vm473, %v946, %v948
        %v952 = vsel %vm473, %v948, %v950
        %955 = vst [vmem:[#allocation3 + $0x40] sm:$0xff] %v951
        %956 = vst [vmem:[#allocation3 + $0x48] sm:$0xff] %v952
        %v957 = vld [vmem:[#allocation2] sm:$0xff]
        %v958 = vld [vmem:[#allocation2 + $0x8] sm:$0xff]
        %v959 = vld [vmem:[#allocation2 + $0x10] sm:$0xff]
        %v960 = vld [vmem:[%s1] sm:$0xa]
        %v963 = vunpack.c.l.s4 1983009808
        %v964 = vunpack.c.0.s8 %v963
        %v965 = vlaneseq
        %v966 = vshrl.u32 %v965, 7
        %v967 = vsub.s32 %v964, %v966
        %v968 = vrot.slane %v960, %v967
        %v969 = vcombine.high %v968, %v968
        %v971 = vpack.i.b16 %v968, %v968
        %v973 = vlaneseq
        %v974 = vshrl.u32 %v973, 7
        %v975 = vsub.s32 1, %v974
        %v976 = vrot.slane %v971, %v975
        %v978 = vpack.i.b16 %v969, %v969
        %v980 = vlaneseq
        %v981 = vshrl.u32 %v980, 7
        %v982 = vsub.s32 1, %v981
        %v983 = vrot.slane %v978, %v982
        %986 = vrot.lane.b32.xlu0 %v976, 18
        %v987 = vpop.permute.xlu0 %986
        %988 = vrot.lane.b32.xlu0 %v983, 18
        %v989 = vpop.permute.xlu0 %988
        %v990 = vsel %vm513, %v987, %v989
        %v994 = vmul.bf16 %v957, %v987
        %v995 = vmul.bf16 %v958, %v990
        %v996 = vmul.bf16 %v959, %v989
        %1000 = vrot.lane.b32.xlu0 %v994, 110
        %v1001 = vpop.permute.xlu0 %1000
        %1002 = vrot.lane.b32.xlu0 %v995, 110
        %v1003 = vpop.permute.xlu0 %1002
        %1004 = vrot.lane.b32.xlu0 %v996, 110
        %v1005 = vpop.permute.xlu0 %1004
        %v1006 = vsel %vm530, %v1001, %v1003
        %v1007 = vsel %vm530, %v1003, %v1005
        %1010 = vst [vmem:[#allocation3 + $0x50] sm:$0xff] %v1006
        %1011 = vst [vmem:[#allocation3 + $0x58] sm:$0xff] %v1007
        %v1012 = vld [vmem:[#allocation2] sm:$0xff]
        %v1013 = vld [vmem:[#allocation2 + $0x8] sm:$0xff]
        %v1014 = vld [vmem:[#allocation2 + $0x10] sm:$0xff]
        %v1015 = vld [vmem:[%s1] sm:$0x5]
        %v1018 = vunpack.c.l.s4 1983009808
        %v1019 = vunpack.c.0.s8 %v1018
        %v1020 = vlaneseq
        %v1021 = vshrl.u32 %v1020, 7
        %v1022 = vsub.s32 %v1019, %v1021
        %v1023 = vrot.slane %v1015, %v1022
        %v1024 = vcombine.high %v1023, %v1023
        %v1026 = vpack.i.b16 %v1023, %v1023
        %v1028 = vlaneseq
        %v1029 = vshrl.u32 %v1028, 7
        %v1030 = vsub.s32 0, %v1029
        %v1031 = vrot.slane %v1026, %v1030
        %v1033 = vpack.i.b16 %v1024, %v1024
        %v1035 = vlaneseq
        %v1036 = vshrl.u32 %v1035, 7
        %v1037 = vsub.s32 0, %v1036
        %v1038 = vrot.slane %v1033, %v1037
        %1041 = vrot.lane.b32.xlu0 %v1031, 32
        %v1042 = vpop.permute.xlu0 %1041
        %1043 = vrot.lane.b32.xlu0 %v1038, 32
        %v1044 = vpop.permute.xlu0 %1043
        %v1045 = vsel %vm570, %v1042, %v1044
        %v1049 = vmul.bf16 %v1012, %v1042
        %v1050 = vmul.bf16 %v1013, %v1045
        %v1051 = vmul.bf16 %v1014, %v1044
        %1055 = vrot.lane.b32.xlu0 %v1049, 96
        %v1056 = vpop.permute.xlu0 %1055
        %1057 = vrot.lane.b32.xlu0 %v1050, 96
        %v1058 = vpop.permute.xlu0 %1057
        %1059 = vrot.lane.b32.xlu0 %v1051, 96
        %v1060 = vpop.permute.xlu0 %1059
        %v1061 = vsel %vm587, %v1056, %v1058
        %v1062 = vsel %vm587, %v1058, %v1060
        %1065 = vst [vmem:[#allocation3 + $0x60] sm:$0xff] %v1061
        %1066 = vst [vmem:[#allocation3 + $0x68] sm:$0xff] %v1062
        %v1067 = vld [vmem:[#allocation2] sm:$0xff]
        %v1068 = vld [vmem:[#allocation2 + $0x8] sm:$0xff]
        %v1069 = vld [vmem:[#allocation2 + $0x10] sm:$0xff]
        %1073 = vrot.lane.b32.xlu0 %v1067, 95
        %v1074 = vpop.permute.xlu0 %1073
        %1075 = vrot.lane.b32.xlu0 %v1068, 95
        %v1076 = vpop.permute.xlu0 %1075
        %1077 = vrot.lane.b32.xlu0 %v1069, 95
        %v1078 = vpop.permute.xlu0 %1077
        %v1079 = vsel %vm606, %v1074, %v1076
        %v1080 = vsel %vm606, %v1076, %v1078
        %1083 = vst [vmem:[#allocation3 + $0x70] sm:$0xff] %v1079
        %1084 = vst [vmem:[#allocation3 + $0x78] sm:$0xff] %v1080
        %v1085 = vld [vmem:[#allocation2] sm:$0xff]
        %v1086 = vld [vmem:[#allocation2 + $0x8] sm:$0xff]
        %v1087 = vld [vmem:[#allocation2 + $0x10] sm:$0xff]
        %v1088 = vld [vmem:[%s1] sm:$0xa]
        %v1091 = vunpack.c.l.s4 1983009808
        %v1092 = vunpack.c.0.s8 %v1091
        %v1093 = vlaneseq
        %v1094 = vshrl.u32 %v1093, 7
        %v1095 = vsub.s32 %v1092, %v1094
        %v1096 = vrot.slane %v1088, %v1095
        %v1097 = vcombine.high %v1096, %v1096
        %v1099 = vpack.i.b16 %v1096, %v1096
        %v1101 = vlaneseq
        %v1102 = vshrl.u32 %v1101, 7
        %v1103 = vsub.s32 1, %v1102
        %v1104 = vrot.slane %v1099, %v1103
        %v1106 = vpack.i.b16 %v1097, %v1097
        %v1108 = vlaneseq
        %v1109 = vshrl.u32 %v1108, 7
        %v1110 = vsub.s32 1, %v1109
        %v1111 = vrot.slane %v1106, %v1110
        %1114 = vrot.lane.b32.xlu0 %v1104, 34
        %v1115 = vpop.permute.xlu0 %1114
        %1116 = vrot.lane.b32.xlu0 %v1111, 34
        %v1117 = vpop.permute.xlu0 %1116
        %v1118 = vsel %vm646, %v1115, %v1117
        %v1122 = vmul.bf16 %v1085, %v1115
        %v1123 = vmul.bf16 %v1086, %v1118
        %v1124 = vmul.bf16 %v1087, %v1117
        %1128 = vrot.lane.b32.xlu0 %v1122, 94
        %v1129 = vpop.permute.xlu0 %1128
        %1130 = vrot.lane.b32.xlu0 %v1123, 94
        %v1131 = vpop.permute.xlu0 %1130
        %1132 = vrot.lane.b32.xlu0 %v1124, 94
        %v1133 = vpop.permute.xlu0 %1132
        %v1134 = vsel %vm663, %v1129, %v1131
        %v1135 = vsel %vm663, %v1131, %v1133
        %1138 = vst [vmem:[#allocation3 + $0x80] sm:$0xff] %v1134
        %1139 = vst [vmem:[#allocation3 + $0x88] sm:$0xff] %v1135
        %v1140 = vld [vmem:[#allocation3] sm:$0xff]
        %v1141 = vld [vmem:[#allocation3 + $0x8] sm:$0xff]
        %v1142 = vld [vmem:[#allocation3 + $0x10] sm:$0xff]
        %v1143 = vld [vmem:[#allocation3 + $0x18] sm:$0xff]
        %v1144 = vld [vmem:[#allocation3 + $0x20] sm:$0xff]
        %v1145 = vld [vmem:[#allocation3 + $0x28] sm:$0xff]
        %v1146 = vld [vmem:[#allocation3 + $0x30] sm:$0xff]
        %v1147 = vld [vmem:[#allocation3 + $0x38] sm:$0xff]
        %v1148 = vld [vmem:[#allocation3 + $0x40] sm:$0xff]
        %v1149 = vld [vmem:[#allocation3 + $0x48] sm:$0xff]
        %v1150 = vld [vmem:[#allocation3 + $0x50] sm:$0xff]
        %v1151 = vld [vmem:[#allocation3 + $0x58] sm:$0xff]
        %v1152 = vld [vmem:[#allocation3 + $0x60] sm:$0xff]
        %v1153 = vld [vmem:[#allocation3 + $0x68] sm:$0xff]
        %v1154 = vld [vmem:[#allocation3 + $0x70] sm:$0xff]
        %v1155 = vld [vmem:[#allocation3 + $0x78] sm:$0xff]
        %v1156 = vld [vmem:[#allocation3 + $0x80] sm:$0xff]
        %v1157 = vld [vmem:[#allocation3 + $0x88] sm:$0xff]
        %v1158 = vld [vmem:[%s5] sm:$0xff]
        %v1159 = vld [vmem:[%s5 + $0x8] sm:$0xff]
        %1161 = vset.pattern.permute.xlu0 0
        %1162 = vperm.xlu0 %1161, %v1158
        %v1163 = vpop.permute.xlu0 %1162
        %1166 = vset.pattern.permute.xlu0 0
        %1167 = vperm.xlu0 %1166, %v1159
        %v1168 = vpop.permute.xlu0 %1167
        %v1172 = vunpack.c.l.b16 %v779
        %v1173 = vunpack.c.h.b16 %v779
        %v1174 = vunpack.c.l.b16 %v780
        %v1175 = vunpack.c.h.b16 %v780
        %v1176 = vpack.c.b16 %v1174, %v1172
        %v1177 = vpack.c.b16 %v1175, %v1173
        %v1180 = vsel %vm709, %v1177, 0
        %1182 = vmatprep.subr.bf16.mxu0 %v1141
        %1183 = vmatpush1.bf16.msra.mxu0 %v1140
        %1184 = vmatprep.subr.bf16.mxu0 %v1143
        %1185 = vmatpush1.bf16.msra.mxu0 %v1142
        %1186 = vmatprep.subr.bf16.mxu0 %v1145
        %1187 = vmatpush1.bf16.msra.mxu0 %v1144
        %1188 = vmatprep.subr.bf16.mxu0 %v1147
        %1189 = vmatpush1.bf16.msra.mxu0 %v1146
        %1190 = vmatprep.subr.bf16.mxu0 %v1149
        %1191 = vmatpush1.bf16.msra.mxu0 %v1148
        %1192 = vmatprep.subr.bf16.mxu0 %v1151
        %1193 = vmatpush1.bf16.msra.mxu0 %v1150
        %1194 = vmatprep.subr.bf16.mxu0 %v1153
        %1195 = vmatpush1.bf16.msra.mxu0 %v1152
        %1196 = vmatprep.subr.bf16.mxu0 %v1155
        %1197 = vmatpush1.bf16.msra.mxu0 %v1154
        %1198 = vmatprep.subr.bf16.mxu0 %v1157
        %1199 = vmatpush1.bf16.msra.mxu0 %v1156
        %1200 = vmatprep.subr.bf16.mxu0 0
        %1201 = vmatpush1.bf16.msra.mxu0 0
        %1202 = vmatprep.subr.bf16.mxu0 0
        %1203 = vmatpush1.bf16.msra.mxu0 0
        %1204 = vmatprep.subr.bf16.mxu0 0
        %1205 = vmatpush1.bf16.msra.mxu0 0
        %1206 = vmatprep.subr.bf16.mxu0 0
        %1207 = vmatpush1.bf16.msra.mxu0 0
        %1208 = vmatprep.subr.bf16.mxu0 0
        %1209 = vmatpush1.bf16.msra.mxu0 0
        %1210 = vmatprep.subr.bf16.mxu0 0
        %1211 = vmatpush1.bf16.msra.mxu0 0
        %1212 = vmatprep.subr.bf16.mxu0 0
        %1213 = vmatpush1.bf16.msra.mxu0 0
        %1214 = vmatprep.mubr.bf16.mxu0 %v1180
        %1215 = vmatmul.mubr.bf16.gmra.mrb[0].mxu0 %v1176
        %v1216 = vpop.f32.mrb[0].mxu0
        %v1217 = vadd.f32 %v1163, %v1216
        %v1218 = vpop.f32.mrb[0].mxu0
        %v1219 = vadd.f32 %v1163, %v1218
        %v1220 = vpop.f32.mrb[0].mxu0
        %v1221 = vadd.f32 %v1168, %v1220
        %v1222 = vpop.f32.mrb[0].mxu0
        %v1223 = vadd.f32 %v1168, %v1222
        %1224 = vdwg.mxu0
        %v1225 = vmul.f32 %v1217, 0.1
        %v1226 = vmul.f32 %v1219, 0.1
        %v1227 = vmul.f32 %v1221, 0.1
        %v1228 = vmul.f32 %v1223, 0.1
        %v1229 = vld [vmem:[%s241] sm:$0xff]
        %v1230 = vld [vmem:[%s241 + $0x8] sm:$0xff]
        %v1231 = vld [vmem:[%s241 + $0x10] sm:$0xff]
        %v1232 = vld [vmem:[%s241 + $0x18] sm:$0xff]
        %v1233 = vadd.f32 %v1225, %v1229
        %v1234 = vadd.f32 %v1226, %v1230
        %v1235 = vadd.f32 %v1227, %v1231
        %v1236 = vadd.f32 %v1228, %v1232
        %1237 = vst [vmem:[%s269] sm:$0xff] %v1233
        %1238 = vst [vmem:[%s269 + $0x8] sm:$0xff] %v1234
        %1239 = vst [vmem:[%s269 + $0x10] sm:$0xff] %v1235
        %1240 = vst [vmem:[%s269 + $0x18] sm:$0xff] %v1236
        %s1241 = sand.u32 %s162, 1
        %s1242 = scalar_lea.sflag [#allocation6], %s1241
        %s1243 = sand.u32 %s162, 1
        %s1244 = smul.addr %s1243, 32
        %s1245 = scalar_lea.vmem [#allocation7], %s1244
        // Predicated region
        $region49: #{tpu_custom_call.1} parent=43 // pred_check
          %p1246 = pneg %p172
        $region50: #{tpu_custom_call.1} parent=43 // pred_check_branch
          %1248 = sbr.rel (%p1246) target = $region52
        $region51: #{tpu_custom_call.1} parent=43 // pred_region
          %s1250 = ssub.s32 512, 512
          %1251 = vsyncadd %s1242, %s1250
          %s1252 = smul.addr %s23, 4
          %s1253 = smul.addr %s1252, 128
          %s1254 = scalar_lea.hbm %s6, %s1253
          %s1255 = sshll.u32 %s1245, 4
          %s1256 = int_to_ptr.vmem [resolvable:$true] %s1255
          %1261 = dma.vmem_to_hbm [thread:$0]  %s1256, 512, %s1254, %s1242, 256, 256, 16
        $region52: #{tpu_custom_call.1} parent=43 // pred_fallthru
          _
      $region44: #{tpu_custom_call.1} parent=5 // pred_fallthru
        _
      %p1262 = scmp.le.s32.totalorder 2, %s18
      // Predicated region
      $region53: #{tpu_custom_call.1} parent=5 // pred_check
        %p1263 = pneg %p1262
      $region54: #{tpu_custom_call.1} parent=5 // pred_check_branch
        %1265 = sbr.rel (%p1263) target = $region56
      $region55: #{tpu_custom_call.1} parent=5 // pred_region
        %s1266 = ssub.s32 %s18, 2
        // Predicated region
        $region57: #{tpu_custom_call.1} parent=55 // pred_check
          %p1267 = pneg %p178
        $region58: #{tpu_custom_call.1} parent=55 // pred_check_branch
          %1269 = sbr.rel (%p1267) target = $region60
        $region59: #{tpu_custom_call.1} parent=55 // pred_region
          %s1270 = sand.u32 %s163, 1
          %s1271 = scalar_lea.sflag [#allocation6], %s1270
          %s1272 = sand.u32 %s163, 1
          %s1273 = smul.addr %s1272, 32
          %s1274 = scalar_lea.vmem [#allocation7], %s1273
          %1275 = dma.done %s1271, 512
        $region60: #{tpu_custom_call.1} parent=55 // pred_fallthru
          _
      $region56: #{tpu_custom_call.1} parent=5 // pred_fallthru
        _
    $region6: #{tpu_custom_call.1} parent=1 // loop_footer
      %s22 = sadd.s32 1, %s18
    $region7: #{tpu_custom_call.1} parent=1 // loop_footer_branch
      %17 = sbr.rel target = $region3
    $region8: #{tpu_custom_call.1} parent=1 // loop_exit
      _
    %1276 = vsyncpa [#allocation5], 1
    %s1277 = scalar_lea.sflag [#allocation5], 1
    %1278 = vsyncpa %s1277, 1
    %1279 = vsyncpa [#allocation6], 1
    %s1280 = scalar_lea.sflag [#allocation6], 1
    %1281 = vsyncpa %s1280, 1

</llo_original>
